<compile_context>
chip_gen: v6e
topology: v6e:2x2x1
jax: 0.10.0
libtpu: 0.0.40
codegen_flags: <defaults>
</compile_context>

<pallas_src>
import functools

import jax
import jax.numpy as jnp
from jax.experimental import pallas as pl
from jax.experimental.pallas import tpu as pltpu

_VMEM_LIMIT = 48 * 1024 * 1024      # explicit scoped-VMEM limit: above the 16/32 MiB
                                    # defaults, below physical on v5e/v6e/v7x
_VMEM_BUDGET = 40 * 1024 * 1024     # working-set target used when sizing tiles
_FFN_RESIDENT_WEIGHT_BUDGET = 24 * 1024 * 1024   # fuse FF1+FF2 if both weights fit


def _tile(dim, preferred, granularity):
    """Largest multiple of `granularity` <= `preferred` that divides `dim`, else `dim`."""
    if dim <= preferred:
        return dim
    t = (preferred // granularity) * granularity
    while t >= granularity:
        if dim % t == 0:
            return t
        t -= granularity
    return dim


def _shrink_rows(tm, tk, tn, in_itemsize):
    """Halve the row tile until the (double-buffered) working set fits the budget."""
    def usage(t):
        return (2 * (t * tk + tk * tn + t * tn) * in_itemsize   # x, w, out (x2 buffers)
                + t * tn * 4                                    # f32 accumulator
                + 8 * tn * 4)                                   # bias / LN vectors
    while tm > 8 and usage(tm) > _VMEM_BUDGET:
        tm = max(8, (tm // 2) // 8 * 8)
    return tm


# --------- tiled matmul + bias (+ReLU) (+residual + LayerNorm) kernel -------
def _matmul_kernel(*refs, activation, fuse_ln, eps):
    if fuse_ln:
        x_ref, w_ref, b_ref, res_ref, g_ref, bln_ref, o_ref, acc_ref = refs
    else:
        x_ref, w_ref, b_ref, o_ref, acc_ref = refs

    k = pl.program_id(2)

    @pl.when(k == 0)
    def _():
        acc_ref[...] = jnp.zeros(acc_ref.shape, acc_ref.dtype)

    # MXU matmul in the input dtype (bf16 on v6e/v7x), f32 accumulation.
    acc_ref[...] += jnp.dot(x_ref[...], w_ref[...],
                            preferred_element_type=jnp.float32)

    @pl.when(k == pl.num_programs(2) - 1)
    def _():
        acc = acc_ref[...] + b_ref[...]
        if activation == "relu":
            acc = jnp.maximum(acc, 0.0)
        if fuse_ln:
            acc = acc + res_ref[...].astype(jnp.float32)
            mu = jnp.mean(acc, axis=-1, keepdims=True)
            xc = acc - mu
            var = jnp.mean(xc * xc, axis=-1, keepdims=True)
            acc = xc * jax.lax.rsqrt(var + eps) * g_ref[...] + bln_ref[...]
        o_ref[...] = acc.astype(o_ref.dtype)


def matmul_bias(x, w, b, *, activation=None, residual=None, ln_gamma=None,
                ln_beta=None, eps=1e-5, out_dtype=None):
    """x:(M,K) @ w:(K,N) + b, optional ReLU, optional fused residual+LayerNorm."""
    M, K = x.shape
    K2, N = w.shape
    assert K == K2
    fuse_ln = ln_gamma is not None
    out_dtype = out_dtype if out_dtype is not None else x.dtype

    tn = N if fuse_ln else _tile(N, 256, 128)   # LN epilogue needs whole rows
    tk = _tile(K, 512, 128)                     # always divides K exactly
    tm = _shrink_rows(_tile(M, 256, 8), tk, tn, x.dtype.itemsize)

    grid = (pl.cdiv(M, tm), pl.cdiv(N, tn), K // tk)

    in_specs = [
        pl.BlockSpec((tm, tk), lambda i, j, k: (i, k)),   # rows stream
        pl.BlockSpec((tk, tn), lambda i, j, k: (k, j)),   # weight tile streams over K/N
        pl.BlockSpec((1, tn), lambda i, j, k: (0, j)),    # bias
    ]
    args = [x, w, b.reshape(1, N)]
    if fuse_ln:
        in_specs += [
            pl.BlockSpec((tm, tn), lambda i, j, k: (i, j)),   # residual (tn == N)
            pl.BlockSpec((1, tn), lambda i, j, k: (0, j)),    # LN gamma
            pl.BlockSpec((1, tn), lambda i, j, k: (0, j)),    # LN beta
        ]
        args += [residual, ln_gamma.reshape(1, N), ln_beta.reshape(1, N)]

    flops = 2 * M * K * N
    bytes_accessed = int(x.dtype.itemsize * (M * K + K * N)
                         + jnp.dtype(out_dtype).itemsize * M * N + 4 * N
                         + (x.dtype.itemsize * M * N + 8 * N if fuse_ln else 0))

    return pl.pallas_call(
        functools.partial(_matmul_kernel, activation=activation,
                          fuse_ln=fuse_ln, eps=eps),
        out_shape=jax.ShapeDtypeStruct((M, N), out_dtype),
        grid=grid,
        in_specs=in_specs,
        out_specs=pl.BlockSpec((tm, tn), lambda i, j, k: (i, j)),
        scratch_shapes=[pltpu.VMEM((tm, tn), jnp.float32)],
        compiler_params=pltpu.CompilerParams(
            dimension_semantics=("parallel", "parallel", "arbitrary"),
            vmem_limit_bytes=_VMEM_LIMIT),
        cost_estimate=pl.CostEstimate(flops=flops, transcendentals=0,
                                      bytes_accessed=bytes_accessed),
    )(*args)


# ------------------- flash-style online-softmax attention -------------------
def _flash_attn_kernel(q_ref, k_ref, v_ref, o_ref, m_sc, l_sc, acc_sc, *, scale):
    j = pl.program_id(2)

    @pl.when(j == 0)
    def _():
        m_sc[...] = jnp.full(m_sc.shape, -jnp.inf, m_sc.dtype)
        l_sc[...] = jnp.zeros(l_sc.shape, l_sc.dtype)
        acc_sc[...] = jnp.zeros(acc_sc.shape, acc_sc.dtype)

    q = q_ref[0] * scale                         # fold scale into q: L*D muls
    # q @ k^T without materializing a transposed copy of k.
    s = jax.lax.dot_general(q, k_ref[0], (((1,), (1,)), ((), ())),
                            preferred_element_type=jnp.float32)
    m_prev = m_sc[...]
    m_new = jnp.maximum(m_prev, jnp.max(s, axis=-1, keepdims=True))
    alpha = jnp.exp(m_prev - m_new)
    p = jnp.exp(s - m_new)
    l_sc[...] = alpha * l_sc[...] + jnp.sum(p, axis=-1, keepdims=True)
    acc_sc[...] = alpha * acc_sc[...] + jnp.dot(
        p.astype(v_ref.dtype), v_ref[0], preferred_element_type=jnp.float32)
    m_sc[...] = m_new

    @pl.when(j == pl.num_programs(2) - 1)
    def _():
        out = acc_sc[...] * pl.reciprocal(l_sc[...], approx=True)
        o_ref[...] = out[None].astype(o_ref.dtype)


def flash_attention(q, k, v, scale):
    """q,k,v: (B*H, L, D) -> softmax(q k^T * scale) v, KV-tiled online softmax."""
    BH, L, D = q.shape
    tq = _tile(L, 256, 8)
    tkv = _tile(L, 512, 8)          # must divide L exactly (guaranteed by _tile)
    grid = (BH, pl.cdiv(L, tq), L // tkv)
    q_spec = pl.BlockSpec((1, tq, D), lambda b, i, j: (b, i, 0))
    kv_spec = pl.BlockSpec((1, tkv, D), lambda b, i, j: (b, j, 0))
    return pl.pallas_call(
        functools.partial(_flash_attn_kernel, scale=scale),
        out_shape=jax.ShapeDtypeStruct((BH, L, D), q.dtype),
        grid=grid,
        in_specs=[q_spec, kv_spec, kv_spec],
        out_specs=pl.BlockSpec((1, tq, D), lambda b, i, j: (b, i, 0)),
        scratch_shapes=[pltpu.VMEM((tq, 1), jnp.float32),
                        pltpu.VMEM((tq, 1), jnp.float32),
                        pltpu.VMEM((tq, D), jnp.float32)],
        compiler_params=pltpu.CompilerParams(
            dimension_semantics=("parallel", "parallel", "arbitrary"),
            vmem_limit_bytes=_VMEM_LIMIT),
        cost_estimate=pl.CostEstimate(
            flops=4 * BH * L * L * D, transcendentals=BH * L * L,
            bytes_accessed=int(4 * BH * L * D * q.dtype.itemsize)),
    )(q, k, v)


# -------- fused FFN: FF1 + ReLU + FF2 + residual + LayerNorm (one kernel) ----
def _ffn_ln_kernel(x_ref, w1_ref, b1_ref, w2_ref, b2_ref, g_ref, bln_ref, o_ref,
                   *, eps):
    x = x_ref[...]
    h = jnp.dot(x, w1_ref[...], preferred_element_type=jnp.float32) + b1_ref[...]
    h = jnp.maximum(h, 0.0)
    ff = jnp.dot(h.astype(x.dtype), w2_ref[...],
                 preferred_element_type=jnp.float32)
    ff = ff + b2_ref[...] + x.astype(jnp.float32)         # residual is the FFN input
    mu = jnp.mean(ff, axis=-1, keepdims=True)
    xc = ff - mu
    var = jnp.mean(xc * xc, axis=-1, keepdims=True)
    y = xc * jax.lax.rsqrt(var + eps) * g_ref[...] + bln_ref[...]
    o_ref[...] = y.astype(o_ref.dtype)


def ffn_layernorm(x, w1, b1, w2, b2, gamma, beta, *, eps=1e-5, out_dtype=None):
    M, E = x.shape
    _, F = w1.shape
    out_dtype = out_dtype if out_dtype is not None else x.dtype
    itemsize = x.dtype.itemsize

    w_bytes = 2 * E * F * w1.dtype.itemsize + (2 * F + 6 * E) * 4
    tm = _tile(M, 256, 8)
    def usage(t):   # resident weights + double-buffered x/out + f32 hidden
        return w_bytes + 4 * t * E * itemsize + t * F * 4
    while tm > 8 and usage(tm) > _VMEM_BUDGET:
        tm = max(8, (tm // 2) // 8 * 8)

    return pl.pallas_call(
        functools.partial(_ffn_ln_kernel, eps=eps),
        out_shape=jax.ShapeDtypeStruct((M, E), out_dtype),
        grid=(pl.cdiv(M, tm),),
        in_specs=[
            pl.BlockSpec((tm, E), lambda i: (i, 0)),   # rows stream
            pl.BlockSpec((E, F), lambda i: (0, 0)),    # w1 resident
            pl.BlockSpec((1, F), lambda i: (0, 0)),
            pl.BlockSpec((F, E), lambda i: (0, 0)),    # w2 resident
            pl.BlockSpec((1, E), lambda i: (0, 0)),
            pl.BlockSpec((1, E), lambda i: (0, 0)),
            pl.BlockSpec((1, E), lambda i: (0, 0)),
        ],
        out_specs=pl.BlockSpec((tm, E), lambda i: (i, 0)),
        compiler_params=pltpu.CompilerParams(
            dimension_semantics=("parallel",),
            vmem_limit_bytes=_VMEM_LIMIT),
        cost_estimate=pl.CostEstimate(
            flops=4 * M * E * F, transcendentals=0,
            bytes_accessed=int(itemsize * 2 * M * E
                               + w1.dtype.itemsize * 2 * E * F)),
    )(x, w1, b1.reshape(1, F), w2, b2.reshape(1, E),
      gamma.reshape(1, E), beta.reshape(1, E))


def feed_forward_ln(y, p, *, out_dtype, eps=1e-5):
    E = y.shape[1]
    F = p["w1"].shape[1]
    if 2 * E * F * p["w1"].dtype.itemsize <= _FFN_RESIDENT_WEIGHT_BUDGET:
        return ffn_layernorm(y, p["w1"], p["b1"], p["w2"], p["b2"],
                             p["ln2_g"], p["ln2_b"], eps=eps, out_dtype=out_dtype)
    # Large-E fallback: K/N-tiled matmuls; the hidden round-trips HBM once.
    h = matmul_bias(y, p["w1"], p["b1"], activation="relu", out_dtype=y.dtype)
    return matmul_bias(h, p["w2"], p["b2"], residual=y,
                       ln_gamma=p["ln2_g"], ln_beta=p["ln2_b"],
                       eps=eps, out_dtype=out_dtype)


# --------------------------------- full block --------------------------------
def prepare_params(torch_params, compute_dtype=jnp.float32):
    """Pre-transpose weights to (in, out) layout and cast once (outside jit)."""
    p, f32 = torch_params, jnp.float32
    return {
        "wqkv": jnp.asarray(p["in_proj_w"]).T.astype(compute_dtype),
        "bqkv": jnp.asarray(p["in_proj_b"], f32),
        "wo": jnp.asarray(p["out_proj_w"]).T.astype(compute_dtype),
        "bo": jnp.asarray(p["out_proj_b"], f32),
        "ln1_g": jnp.asarray(p["ln1_g"], f32), "ln1_b": jnp.asarray(p["ln1_b"], f32),
        "w1": jnp.asarray(p["w1"]).T.astype(compute_dtype),
        "b1": jnp.asarray(p["b1"], f32),
        "w2": jnp.asarray(p["w2"]).T.astype(compute_dtype),
        "b2": jnp.asarray(p["b2"], f32),
        "ln2_g": jnp.asarray(p["ln2_g"], f32), "ln2_b": jnp.asarray(p["ln2_b"], f32),
    }


def transformer_block(x, p, heads):
    """x: (L, N, E) seq-first (nn.MultiheadAttention default batch_first=False)."""
    L, N, E = x.shape
    D = E // heads
    scale = 1.0 / float(D) ** 0.5
    compute_dtype = p["wqkv"].dtype
    out_dtype = x.dtype

    x_flat = x.astype(compute_dtype).reshape(L * N, E)        # rows: l*N + n

    # fused QKV projection (one matmul, (L*N, 3E))
    qkv = matmul_bias(x_flat, p["wqkv"], p["bqkv"], out_dtype=compute_dtype)

    # Head split: single packed transpose (see TODO(synk) in header).
    qkv_h = (qkv.reshape(L, N, 3, heads, D)
                .transpose(2, 1, 3, 0, 4)
                .reshape(3, N * heads, L, D))
    attn = flash_attention(qkv_h[0], qkv_h[1], qkv_h[2], scale)   # (N*H, L, D)
    attn = (attn.reshape(N, heads, L, D)
                .transpose(2, 0, 1, 3)
                .reshape(L * N, E))                               # col = h*D + d

    # out_proj + residual + LayerNorm1 fused into the matmul epilogue
    y = matmul_bias(attn, p["wo"], p["bo"], residual=x_flat,
                    ln_gamma=p["ln1_g"], ln_beta=p["ln1_b"],
                    out_dtype=compute_dtype)

    # FFN + residual + LayerNorm2 (hidden stays in VMEM)
    out = feed_forward_ln(y, p, out_dtype=out_dtype)
    return out.reshape(L, N, E)


# ------------------------------ pure-JAX reference ---------------------------
def _ref_transformer_block(x, p, heads, eps=1e-5):
    L, N, E = x.shape
    D = E // heads
    scale = 1.0 / float(D) ** 0.5

    def linear(t, w, b):
        return jnp.einsum("...e,fe->...f", t, w) + b

    def layernorm(t, g, b):
        mu = jnp.mean(t, axis=-1, keepdims=True)
        var = jnp.mean((t - mu) ** 2, axis=-1, keepdims=True)
        return (t - mu) * jax.lax.rsqrt(var + eps) * g + b

    qkv = linear(x, p["in_proj_w"], p["in_proj_b"])
    q, k, v = jnp.split(qkv, 3, axis=-1)

    def split(t):
        return t.reshape(L, N, heads, D).transpose(1, 2, 0, 3)   # (N, H, L, D)

    qh, kh, vh = split(q), split(k), split(v)
    s = jnp.einsum("nhld,nhmd->nhlm", qh, kh) * scale
    pa = jax.nn.softmax(s, axis=-1)
    o = jnp.einsum("nhlm,nhmd->nhld", pa, vh)
    o = o.transpose(2, 0, 1, 3).reshape(L, N, E)
    attended = linear(o, p["out_proj_w"], p["out_proj_b"])
    y = layernorm(attended + x, p["ln1_g"], p["ln1_b"])
    h = jnp.maximum(linear(y, p["w1"], p["b1"]), 0.0)
    ff = linear(h, p["w2"], p["b2"])
    return layernorm(ff + y, p["ln2_g"], p["ln2_b"])


if __name__ == "__main__":
    # Toy config: embed_size=32, heads=4, seq=8, batch=2; x is (L, N, E) seq-first.
    E, H = 32, 4
    L, N = 8, 2

    keys = jax.random.split(jax.random.PRNGKey(0), 13)
    s = 0.05
    params = {
        "in_proj_w":  jax.random.normal(keys[0], (3 * E, E), jnp.float32) * s,
        "in_proj_b":  jax.random.normal(keys[1], (3 * E,), jnp.float32) * s,
        "out_proj_w": jax.random.normal(keys[2], (E, E), jnp.float32) * s,
        "out_proj_b": jax.random.normal(keys[3], (E,), jnp.float32) * s,
        "ln1_g": 1.0 + 0.1 * jax.random.normal(keys[4], (E,), jnp.float32),
        "ln1_b": 0.1 * jax.random.normal(keys[5], (E,), jnp.float32),
        "w1": jax.random.normal(keys[6], (4 * E, E), jnp.float32) * s,
        "b1": jax.random.normal(keys[7], (4 * E,), jnp.float32) * s,
        "w2": jax.random.normal(keys[8], (E, 4 * E), jnp.float32) * s,
        "b2": jax.random.normal(keys[9], (E,), jnp.float32) * s,
        "ln2_g": 1.0 + 0.1 * jax.random.normal(keys[10], (E,), jnp.float32),
        "ln2_b": 0.1 * jax.random.normal(keys[11], (E,), jnp.float32),
    }
    x = jax.random.normal(keys[12], (L, N, E), jnp.float32)

    ref = _ref_transformer_block(x, params, H)
    block = jax.jit(transformer_block, static_argnames=("heads",))

    # f32 MXU path (exact-ish check).
    out = jax.block_until_ready(block(x, prepare_params(params, jnp.float32), heads=H))
    assert out.shape == (L, N, E), out.shape
    err = float(jnp.max(jnp.abs(out - ref)))
    assert err < 2e-2, f"f32 path max err {err}"

    # bf16 MXU path (production dtype on v6e/v7x; f32 accumulation + epilogues).
    out16 = jax.block_until_ready(block(x, prepare_params(params, jnp.bfloat16), heads=H))
    err16 = float(jnp.max(jnp.abs(out16.astype(jnp.float32) - ref)))
    assert err16 < 2e-1, f"bf16 path max err {err16}"

    print("KERNEL_OK")
</pallas_src>

<mosaic_0001>
module attributes {stable_mosaic.version = 11 : i64} {
  func.func @_matmul_kernel(%arg0: i32, %arg1: i32, %arg2: i32, %arg3: memref<16x32xf32, #tpu.memory_space<vmem>>, %arg4: memref<32x96xf32, #tpu.memory_space<vmem>>, %arg5: memref<1x96xf32, #tpu.memory_space<vmem>>, %arg6: memref<16x96xf32, #tpu.memory_space<vmem>>, %arg7: memref<16x96xf32, #tpu.memory_space<vmem>>) attributes {dimension_semantics = [#tpu.dimension_semantics<parallel>, #tpu.dimension_semantics<parallel>, #tpu.dimension_semantics<arbitrary>], iteration_bounds = array<i64: 1, 1, 1>, scalar_prefetch = 0 : i64, scratch_operands = 1 : i64, tpu.core_type = #tpu.core_type<tc>, window_params = [{transform_indices = @transform_0, window_bounds = array<i64: 16, 32>}, {transform_indices = @transform_1, window_bounds = array<i64: 32, 96>}, {transform_indices = @transform_2, window_bounds = array<i64: 1, 96>}, {transform_indices = @transform_3, window_bounds = array<i64: 16, 96>}]} {
    %c0_i32 = arith.constant 0 : i32
    %0 = arith.cmpi eq, %arg2, %c0_i32 : i32
    %1 = arith.extui %0 : i1 to i32
    %c0_i32_0 = arith.constant 0 : i32
    %2 = arith.cmpi ne, %1, %c0_i32_0 : i32
    scf.if %2 {
      %cst_10 = arith.constant 0.000000e+00 : f32
      %12 = vector.broadcast %cst_10 : f32 to vector<16x96xf32>
      %c0_11 = arith.constant 0 : index
      %c0_12 = arith.constant 0 : index
      %13 = vector.load %arg7[%c0_11, %c0_12] : memref<16x96xf32, #tpu.memory_space<vmem>>, vector<16x96xf32>
      tpu.vector_store %arg7[%c0_11, %c0_12], %12 {strides = array<i32>} : memref<16x96xf32, #tpu.memory_space<vmem>>, vector<16x96xf32>,
    } else {
    }
    %c0 = arith.constant 0 : index
    %c0_1 = arith.constant 0 : index
    %3 = vector.load %arg7[%c0, %c0_1] : memref<16x96xf32, #tpu.memory_space<vmem>>, vector<16x96xf32>
    %c0_2 = arith.constant 0 : index
    %c0_3 = arith.constant 0 : index
    %4 = vector.load %arg3[%c0_2, %c0_3] : memref<16x32xf32, #tpu.memory_space<vmem>>, vector<16x32xf32>
    %c0_4 = arith.constant 0 : index
    %c0_5 = arith.constant 0 : index
    %5 = vector.load %arg4[%c0_4, %c0_5] : memref<32x96xf32, #tpu.memory_space<vmem>>, vector<32x96xf32>
    %cst = arith.constant dense<0.000000e+00> : vector<16x96xf32>
    %6 = tpu.matmul %4, %5, %cst {dimension_numbers = #tpu.dot_dimension_numbers<[1], [0], [0], [1], [0, 0, 1, 1], [], []>} : vector<16x32xf32>, vector<32x96xf32>, vector<16x96xf32> -> vector<16x96xf32>
    %7 = arith.addf %3, %6 : vector<16x96xf32>
    %c0_6 = arith.constant 0 : index
    %c0_7 = arith.constant 0 : index
    %8 = vector.load %arg7[%c0_6, %c0_7] : memref<16x96xf32, #tpu.memory_space<vmem>>, vector<16x96xf32>
    tpu.vector_store %arg7[%c0_6, %c0_7], %7 {strides = array<i32>} : memref<16x96xf32, #tpu.memory_space<vmem>>, vector<16x96xf32>,
    %c0_i32_8 = arith.constant 0 : i32
    %9 = arith.cmpi eq, %arg2, %c0_i32_8 : i32
    %10 = arith.extui %9 : i1 to i32
    %c0_i32_9 = arith.constant 0 : i32
    %11 = arith.cmpi ne, %10, %c0_i32_9 : i32
    scf.if %11 {
      %c0_10 = arith.constant 0 : index
      %c0_11 = arith.constant 0 : index
      %12 = vector.load %arg7[%c0_10, %c0_11] : memref<16x96xf32, #tpu.memory_space<vmem>>, vector<16x96xf32>
      %c0_12 = arith.constant 0 : index
      %c0_13 = arith.constant 0 : index
      %13 = vector.load %arg5[%c0_12, %c0_13] : memref<1x96xf32, #tpu.memory_space<vmem>>, vector<1x96xf32>
      %14 = vector.broadcast %13 : vector<1x96xf32> to vector<16x96xf32>
      %15 = arith.addf %12, %14 : vector<16x96xf32>
      %c0_14 = arith.constant 0 : index
      %c0_15 = arith.constant 0 : index
      %16 = vector.load %arg6[%c0_14, %c0_15] : memref<16x96xf32, #tpu.memory_space<vmem>>, vector<16x96xf32>
      tpu.vector_store %arg6[%c0_14, %c0_15], %15 {strides = array<i32>} : memref<16x96xf32, #tpu.memory_space<vmem>>, vector<16x96xf32>,
    } else {
    }
    return
  }
  func.func @transform_0(%arg0: i32, %arg1: i32, %arg2: i32) -> (i32, i32) {
    %c0_i32 = arith.constant 0 : i32
    return %arg0, %arg2 : i32, i32
  }
  func.func @transform_1(%arg0: i32, %arg1: i32, %arg2: i32) -> (i32, i32) {
    %c0_i32 = arith.constant 0 : i32
    return %arg2, %arg1 : i32, i32
  }
  func.func @transform_2(%arg0: i32, %arg1: i32, %arg2: i32) -> (i32, i32) {
    %c0_i32 = arith.constant 0 : i32
    %c0_i32_0 = arith.constant 0 : i32
    return %c0_i32, %arg1 : i32, i32
  }
  func.func @transform_3(%arg0: i32, %arg1: i32, %arg2: i32) -> (i32, i32) {
    %c0_i32 = arith.constant 0 : i32
    return %arg0, %arg1 : i32, i32
  }
}

module attributes {stable_mosaic.version = 11 : i64} {
  func.func @_ffn_ln_kernel(%arg0: i32, %arg1: memref<16x32xf32, #tpu.memory_space<vmem>>, %arg2: memref<32x128xf32, #tpu.memory_space<vmem>>, %arg3: memref<1x128xf32, #tpu.memory_space<vmem>>, %arg4: memref<128x32xf32, #tpu.memory_space<vmem>>, %arg5: memref<1x32xf32, #tpu.memory_space<vmem>>, %arg6: memref<1x32xf32, #tpu.memory_space<vmem>>, %arg7: memref<1x32xf32, #tpu.memory_space<vmem>>, %arg8: memref<16x32xf32, #tpu.memory_space<vmem>>) attributes {dimension_semantics = [#tpu.dimension_semantics<parallel>], iteration_bounds = array<i64: 1>, scalar_prefetch = 0 : i64, scratch_operands = 0 : i64, tpu.core_type = #tpu.core_type<tc>, window_params = [{transform_indices = @transform_0, window_bounds = array<i64: 16, 32>}, {pipeline_mode = #tpu.pipeline_mode<synchronous>, transform_indices = @transform_1, window_bounds = array<i64: 32, 128>}, {pipeline_mode = #tpu.pipeline_mode<synchronous>, transform_indices = @transform_2, window_bounds = array<i64: 1, 128>}, {pipeline_mode = #tpu.pipeline_mode<synchronous>, transform_indices = @transform_3, window_bounds = array<i64: 128, 32>}, {pipeline_mode = #tpu.pipeline_mode<synchronous>, transform_indices = @transform_4, window_bounds = array<i64: 1, 32>}, {pipeline_mode = #tpu.pipeline_mode<synchronous>, transform_indices = @transform_5, window_bounds = array<i64: 1, 32>}, {pipeline_mode = #tpu.pipeline_mode<synchronous>, transform_indices = @transform_6, window_bounds = array<i64: 1, 32>}, {transform_indices = @transform_7, window_bounds = array<i64: 16, 32>}]} {
    %c0 = arith.constant 0 : index
    %c0_0 = arith.constant 0 : index
    %0 = vector.load %arg1[%c0, %c0_0] : memref<16x32xf32, #tpu.memory_space<vmem>>, vector<16x32xf32>
    %c0_1 = arith.constant 0 : index
    %c0_2 = arith.constant 0 : index
    %1 = vector.load %arg2[%c0_1, %c0_2] : memref<32x128xf32, #tpu.memory_space<vmem>>, vector<32x128xf32>
    %cst = arith.constant dense<0.000000e+00> : vector<16x128xf32>
    %2 = tpu.matmul %0, %1, %cst {dimension_numbers = #tpu.dot_dimension_numbers<[1], [0], [0], [1], [0, 0, 1, 1], [], []>} : vector<16x32xf32>, vector<32x128xf32>, vector<16x128xf32> -> vector<16x128xf32>
    %c0_3 = arith.constant 0 : index
    %c0_4 = arith.constant 0 : index
    %3 = vector.load %arg3[%c0_3, %c0_4] : memref<1x128xf32, #tpu.memory_space<vmem>>, vector<1x128xf32>
    %4 = vector.broadcast %3 : vector<1x128xf32> to vector<16x128xf32>
    %5 = arith.addf %2, %4 : vector<16x128xf32>
    %cst_5 = arith.constant 0.000000e+00 : f32
    %6 = vector.broadcast %cst_5 : f32 to vector<16x128xf32>
    %7 = arith.maximumf %5, %6 : vector<16x128xf32>
    %c0_6 = arith.constant 0 : index
    %c0_7 = arith.constant 0 : index
    %8 = vector.load %arg4[%c0_6, %c0_7] : memref<128x32xf32, #tpu.memory_space<vmem>>, vector<128x32xf32>
    %cst_8 = arith.constant dense<0.000000e+00> : vector<16x32xf32>
    %9 = tpu.matmul %7, %8, %cst_8 {dimension_numbers = #tpu.dot_dimension_numbers<[1], [0], [0], [1], [0, 0, 1, 1], [], []>} : vector<16x128xf32>, vector<128x32xf32>, vector<16x32xf32> -> vector<16x32xf32>
    %c0_9 = arith.constant 0 : index
    %c0_10 = arith.constant 0 : index
    %10 = vector.load %arg5[%c0_9, %c0_10] : memref<1x32xf32, #tpu.memory_space<vmem>>, vector<1x32xf32>
    %11 = vector.broadcast %10 : vector<1x32xf32> to vector<16x32xf32>
    %12 = arith.addf %9, %11 : vector<16x32xf32>
    %13 = arith.addf %12, %0 : vector<16x32xf32>
    %cst_11 = arith.constant dense<0.000000e+00> : vector<16xf32>
    %14 = vector.multi_reduction <add>, %13, %cst_11 [1] : vector<16x32xf32> to vector<16xf32>
    %15 = vector.shape_cast %14 : vector<16xf32> to vector<16x1xf32>
    %cst_12 = arith.constant 3.200000e+01 : f32
    %16 = vector.broadcast %cst_12 : f32 to vector<16x1xf32>
    %17 = arith.divf %15, %16 : vector<16x1xf32>
    %18 = vector.broadcast %17 : vector<16x1xf32> to vector<16x32xf32>
    %19 = arith.subf %13, %18 : vector<16x32xf32>
    %20 = arith.mulf %19, %19 : vector<16x32xf32>
    %cst_13 = arith.constant dense<0.000000e+00> : vector<16xf32>
    %21 = vector.multi_reduction <add>, %20, %cst_13 [1] : vector<16x32xf32> to vector<16xf32>
    %22 = vector.shape_cast %21 : vector<16xf32> to vector<16x1xf32>
    %cst_14 = arith.constant 3.200000e+01 : f32
    %23 = vector.broadcast %cst_14 : f32 to vector<16x1xf32>
    %24 = arith.divf %22, %23 : vector<16x1xf32>
    %cst_15 = arith.constant 9.99999974E-6 : f32
    %25 = vector.broadcast %cst_15 : f32 to vector<16x1xf32>
    %26 = arith.addf %24, %25 : vector<16x1xf32>
    %27 = math.rsqrt %26 : vector<16x1xf32>
    %28 = vector.broadcast %27 : vector<16x1xf32> to vector<16x32xf32>
    %29 = arith.mulf %19, %28 : vector<16x32xf32>
    %c0_16 = arith.constant 0 : index
    %c0_17 = arith.constant 0 : index
    %30 = vector.load %arg6[%c0_16, %c0_17] : memref<1x32xf32, #tpu.memory_space<vmem>>, vector<1x32xf32>
    %31 = vector.broadcast %30 : vector<1x32xf32> to vector<16x32xf32>
    %32 = arith.mulf %29, %31 : vector<16x32xf32>
    %c0_18 = arith.constant 0 : index
    %c0_19 = arith.constant 0 : index
    %33 = vector.load %arg7[%c0_18, %c0_19] : memref<1x32xf32, #tpu.memory_space<vmem>>, vector<1x32xf32>
    %34 = vector.broadcast %33 : vector<1x32xf32> to vector<16x32xf32>
    %35 = arith.addf %32, %34 : vector<16x32xf32>
    %c0_20 = arith.constant 0 : index
    %c0_21 = arith.constant 0 : index
    %36 = vector.load %arg8[%c0_20, %c0_21] : memref<16x32xf32, #tpu.memory_space<vmem>>, vector<16x32xf32>
    tpu.vector_store %arg8[%c0_20, %c0_21], %35 {strides = array<i32>} : memref<16x32xf32, #tpu.memory_space<vmem>>, vector<16x32xf32>,
    return
  }
  func.func @transform_0(%arg0: i32) -> (i32, i32) {
    %c0_i32 = arith.constant 0 : i32
    %c0_i32_0 = arith.constant 0 : i32
    return %arg0, %c0_i32 : i32, i32
  }
  func.func @transform_1(%arg0: i32) -> (i32, i32) {
    %c0_i32 = arith.constant 0 : i32
    %c0_i32_0 = arith.constant 0 : i32
    %c0_i32_1 = arith.constant 0 : i32
    return %c0_i32, %c0_i32_0 : i32, i32
  }
  func.func @transform_2(%arg0: i32) -> (i32, i32) {
    %c0_i32 = arith.constant 0 : i32
    %c0_i32_0 = arith.constant 0 : i32
    %c0_i32_1 = arith.constant 0 : i32
    return %c0_i32, %c0_i32_0 : i32, i32
  }
  func.func @transform_3(%arg0: i32) -> (i32, i32) {
    %c0_i32 = arith.constant 0 : i32
    %c0_i32_0 = arith.constant 0 : i32
    %c0_i32_1 = arith.constant 0 : i32
    return %c0_i32, %c0_i32_0 : i32, i32
  }
  func.func @transform_4(%arg0: i32) -> (i32, i32) {
    %c0_i32 = arith.constant 0 : i32
    %c0_i32_0 = arith.constant 0 : i32
    %c0_i32_1 = arith.constant 0 : i32
    return %c0_i32, %c0_i32_0 : i32, i32
  }
  func.func @transform_5(%arg0: i32) -> (i32, i32) {
    %c0_i32 = arith.constant 0 : i32
    %c0_i32_0 = arith.constant 0 : i32
    %c0_i32_1 = arith.constant 0 : i32
    return %c0_i32, %c0_i32_0 : i32, i32
  }
  func.func @transform_6(%arg0: i32) -> (i32, i32) {
    %c0_i32 = arith.constant 0 : i32
    %c0_i32_0 = arith.constant 0 : i32
    %c0_i32_1 = arith.constant 0 : i32
    return %c0_i32, %c0_i32_0 : i32, i32
  }
  func.func @transform_7(%arg0: i32) -> (i32, i32) {
    %c0_i32 = arith.constant 0 : i32
    %c0_i32_0 = arith.constant 0 : i32
    return %arg0, %c0_i32 : i32, i32
  }
}

module attributes {stable_mosaic.version = 11 : i64} {
  func.func @_flash_attn_kernel(%arg0: i32, %arg1: i32, %arg2: i32, %arg3: memref<1x8x8xf32, #tpu.memory_space<vmem>>, %arg4: memref<1x8x8xf32, #tpu.memory_space<vmem>>, %arg5: memref<1x8x8xf32, #tpu.memory_space<vmem>>, %arg6: memref<1x8x8xf32, #tpu.memory_space<vmem>>, %arg7: memref<8x1xf32, #tpu.memory_space<vmem>>, %arg8: memref<8x1xf32, #tpu.memory_space<vmem>>, %arg9: memref<8x8xf32, #tpu.memory_space<vmem>>) attributes {dimension_semantics = [#tpu.dimension_semantics<parallel>, #tpu.dimension_semantics<parallel>, #tpu.dimension_semantics<arbitrary>], iteration_bounds = array<i64: 8, 1, 1>, scalar_prefetch = 0 : i64, scratch_operands = 3 : i64, tpu.core_type = #tpu.core_type<tc>, window_params = [{transform_indices = @transform_0, window_bounds = array<i64: 1, 8, 8>}, {transform_indices = @transform_1, window_bounds = array<i64: 1, 8, 8>}, {transform_indices = @transform_2, window_bounds = array<i64: 1, 8, 8>}, {transform_indices = @transform_3, window_bounds = array<i64: 1, 8, 8>}]} {
    %c0_i32 = arith.constant 0 : i32
    %0 = arith.cmpi eq, %arg2, %c0_i32 : i32
    %1 = arith.extui %0 : i1 to i32
    %c0_i32_0 = arith.constant 0 : i32
    %2 = arith.cmpi ne, %1, %c0_i32_0 : i32
    scf.if %2 {
      %cst_27 = arith.constant 0xFF800000 : f32
      %37 = vector.broadcast %cst_27 : f32 to vector<8x1xf32>
      %c0_28 = arith.constant 0 : index
      %c0_29 = arith.constant 0 : index
      %38 = vector.load %arg7[%c0_28, %c0_29] : memref<8x1xf32, #tpu.memory_space<vmem>>, vector<8x1xf32>
      tpu.vector_store %arg7[%c0_28, %c0_29], %37 {strides = array<i32>} : memref<8x1xf32, #tpu.memory_space<vmem>>, vector<8x1xf32>,
      %cst_30 = arith.constant 0.000000e+00 : f32
      %39 = vector.broadcast %cst_30 : f32 to vector<8x1xf32>
      %c0_31 = arith.constant 0 : index
      %c0_32 = arith.constant 0 : index
      %40 = vector.load %arg8[%c0_31, %c0_32] : memref<8x1xf32, #tpu.memory_space<vmem>>, vector<8x1xf32>
      tpu.vector_store %arg8[%c0_31, %c0_32], %39 {strides = array<i32>} : memref<8x1xf32, #tpu.memory_space<vmem>>, vector<8x1xf32>,
      %cst_33 = arith.constant 0.000000e+00 : f32
      %41 = vector.broadcast %cst_33 : f32 to vector<8x8xf32>
      %c0_34 = arith.constant 0 : index
      %c0_35 = arith.constant 0 : index
      %42 = vector.load %arg9[%c0_34, %c0_35] : memref<8x8xf32, #tpu.memory_space<vmem>>, vector<8x8xf32>
      tpu.vector_store %arg9[%c0_34, %c0_35], %41 {strides = array<i32>} : memref<8x8xf32, #tpu.memory_space<vmem>>, vector<8x8xf32>,
    } else {
    }
    %c0 = arith.constant 0 : index
    %c0_1 = arith.constant 0 : index
    %c0_2 = arith.constant 0 : index
    %3 = vector.load %arg3[%c0, %c0_1, %c0_2] : memref<1x8x8xf32, #tpu.memory_space<vmem>>, vector<1x8x8xf32>
    %4 = vector.shape_cast %3 : vector<1x8x8xf32> to vector<8x8xf32>
    %cst = arith.constant 0.353553385 : f32
    %5 = vector.broadcast %cst : f32 to vector<8x8xf32>
    %6 = arith.mulf %4, %5 : vector<8x8xf32>
    %c0_3 = arith.constant 0 : index
    %c0_4 = arith.constant 0 : index
    %c0_5 = arith.constant 0 : index
    %7 = vector.load %arg4[%c0_3, %c0_4, %c0_5] : memref<1x8x8xf32, #tpu.memory_space<vmem>>, vector<1x8x8xf32>
    %8 = vector.shape_cast %7 : vector<1x8x8xf32> to vector<8x8xf32>
    %cst_6 = arith.constant dense<0.000000e+00> : vector<8x8xf32>
    %9 = tpu.matmul %6, %8, %cst_6 {dimension_numbers = #tpu.dot_dimension_numbers<[1], [1], [0], [0], [0, 0, 1, 0], [], []>} : vector<8x8xf32>, vector<8x8xf32>, vector<8x8xf32> -> vector<8x8xf32>
    %c0_7 = arith.constant 0 : index
    %c0_8 = arith.constant 0 : index
    %10 = vector.load %arg7[%c0_7, %c0_8] : memref<8x1xf32, #tpu.memory_space<vmem>>, vector<8x1xf32>
    %cst_9 = arith.constant dense<0xFF800000> : vector<8xf32>
    %11 = vector.multi_reduction <maximumf>, %9, %cst_9 [1] : vector<8x8xf32> to vector<8xf32>
    %12 = vector.shape_cast %11 : vector<8xf32> to vector<8x1xf32>
    %13 = arith.maximumf %10, %12 : vector<8x1xf32>
    %14 = arith.subf %10, %13 : vector<8x1xf32>
    %15 = math.exp %14 : vector<8x1xf32>
    %16 = vector.broadcast %13 : vector<8x1xf32> to vector<8x8xf32>
    %17 = arith.subf %9, %16 : vector<8x8xf32>
    %18 = math.exp %17 : vector<8x8xf32>
    %c0_10 = arith.constant 0 : index
    %c0_11 = arith.constant 0 : index
    %19 = vector.load %arg8[%c0_10, %c0_11] : memref<8x1xf32, #tpu.memory_space<vmem>>, vector<8x1xf32>
    %20 = arith.mulf %15, %19 : vector<8x1xf32>
    %cst_12 = arith.constant dense<0.000000e+00> : vector<8xf32>
    %21 = vector.multi_reduction <add>, %18, %cst_12 [1] : vector<8x8xf32> to vector<8xf32>
    %22 = vector.shape_cast %21 : vector<8xf32> to vector<8x1xf32>
    %23 = arith.addf %20, %22 : vector<8x1xf32>
    %c0_13 = arith.constant 0 : index
    %c0_14 = arith.constant 0 : index
    %24 = vector.load %arg8[%c0_13, %c0_14] : memref<8x1xf32, #tpu.memory_space<vmem>>, vector<8x1xf32>
    tpu.vector_store %arg8[%c0_13, %c0_14], %23 {strides = array<i32>} : memref<8x1xf32, #tpu.memory_space<vmem>>, vector<8x1xf32>,
    %c0_15 = arith.constant 0 : index
    %c0_16 = arith.constant 0 : index
    %25 = vector.load %arg9[%c0_15, %c0_16] : memref<8x8xf32, #tpu.memory_space<vmem>>, vector<8x8xf32>
    %26 = vector.broadcast %15 : vector<8x1xf32> to vector<8x8xf32>
    %27 = arith.mulf %26, %25 : vector<8x8xf32>
    %c0_17 = arith.constant 0 : index
    %c0_18 = arith.constant 0 : index
    %c0_19 = arith.constant 0 : index
    %28 = vector.load %arg5[%c0_17, %c0_18, %c0_19] : memref<1x8x8xf32, #tpu.memory_space<vmem>>, vector<1x8x8xf32>
    %29 = vector.shape_cast %28 : vector<1x8x8xf32> to vector<8x8xf32>
    %cst_20 = arith.constant dense<0.000000e+00> : vector<8x8xf32>
    %30 = tpu.matmul %18, %29, %cst_20 {dimension_numbers = #tpu.dot_dimension_numbers<[1], [0], [0], [1], [0, 0, 1, 1], [], []>} : vector<8x8xf32>, vector<8x8xf32>, vector<8x8xf32> -> vector<8x8xf32>
    %31 = arith.addf %27, %30 : vector<8x8xf32>
    %c0_21 = arith.constant 0 : index
    %c0_22 = arith.constant 0 : index
    %32 = vector.load %arg9[%c0_21, %c0_22] : memref<8x8xf32, #tpu.memory_space<vmem>>, vector<8x8xf32>
    tpu.vector_store %arg9[%c0_21, %c0_22], %31 {strides = array<i32>} : memref<8x8xf32, #tpu.memory_space<vmem>>, vector<8x8xf32>,
    %c0_23 = arith.constant 0 : index
    %c0_24 = arith.constant 0 : index
    %33 = vector.load %arg7[%c0_23, %c0_24] : memref<8x1xf32, #tpu.memory_space<vmem>>, vector<8x1xf32>
    tpu.vector_store %arg7[%c0_23, %c0_24], %13 {strides = array<i32>} : memref<8x1xf32, #tpu.memory_space<vmem>>, vector<8x1xf32>,
    %c0_i32_25 = arith.constant 0 : i32
    %34 = arith.cmpi eq, %arg2, %c0_i32_25 : i32
    %35 = arith.extui %34 : i1 to i32
    %c0_i32_26 = arith.constant 0 : i32
    %36 = arith.cmpi ne, %35, %c0_i32_26 : i32
    scf.if %36 {
      %c0_27 = arith.constant 0 : index
      %c0_28 = arith.constant 0 : index
      %37 = vector.load %arg9[%c0_27, %c0_28] : memref<8x8xf32, #tpu.memory_space<vmem>>, vector<8x8xf32>
      %c0_29 = arith.constant 0 : index
      %c0_30 = arith.constant 0 : index
      %38 = vector.load %arg8[%c0_29, %c0_30] : memref<8x1xf32, #tpu.memory_space<vmem>>, vector<8x1xf32>
      %39 = tpu.reciprocal %38 {approx = true} : vector<8x1xf32> -> vector<8x1xf32>
      %40 = vector.broadcast %39 : vector<8x1xf32> to vector<8x8xf32>
      %41 = arith.mulf %37, %40 : vector<8x8xf32>
      %42 = vector.shape_cast %41 : vector<8x8xf32> to vector<1x8x8xf32>
      %c0_31 = arith.constant 0 : index
      %c0_32 = arith.constant 0 : index
      %c0_33 = arith.constant 0 : index
      %43 = vector.load %arg6[%c0_31, %c0_32, %c0_33] : memref<1x8x8xf32, #tpu.memory_space<vmem>>, vector<1x8x8xf32>
      tpu.vector_store %arg6[%c0_31, %c0_32, %c0_33], %42 {strides = array<i32>} : memref<1x8x8xf32, #tpu.memory_space<vmem>>, vector<1x8x8xf32>,
    } else {
    }
    return
  }
  func.func @transform_0(%arg0: i32, %arg1: i32, %arg2: i32) -> (i32, i32, i32) {
    %c0_i32 = arith.constant 0 : i32
    %c0_i32_0 = arith.constant 0 : i32
    return %arg0, %arg1, %c0_i32 : i32, i32, i32
  }
  func.func @transform_1(%arg0: i32, %arg1: i32, %arg2: i32) -> (i32, i32, i32) {
    %c0_i32 = arith.constant 0 : i32
    %c0_i32_0 = arith.constant 0 : i32
    return %arg0, %arg2, %c0_i32 : i32, i32, i32
  }
  func.func @transform_2(%arg0: i32, %arg1: i32, %arg2: i32) -> (i32, i32, i32) {
    %c0_i32 = arith.constant 0 : i32
    %c0_i32_0 = arith.constant 0 : i32
    return %arg0, %arg2, %c0_i32 : i32, i32, i32
  }
  func.func @transform_3(%arg0: i32, %arg1: i32, %arg2: i32) -> (i32, i32, i32) {
    %c0_i32 = arith.constant 0 : i32
    %c0_i32_0 = arith.constant 0 : i32
    return %arg0, %arg1, %c0_i32 : i32, i32, i32
  }
}

module attributes {stable_mosaic.version = 11 : i64} {
  func.func @_matmul_kernel(%arg0: i32, %arg1: i32, %arg2: i32, %arg3: memref<16x32xf32, #tpu.memory_space<vmem>>, %arg4: memref<32x32xf32, #tpu.memory_space<vmem>>, %arg5: memref<1x32xf32, #tpu.memory_space<vmem>>, %arg6: memref<16x32xf32, #tpu.memory_space<vmem>>, %arg7: memref<1x32xf32, #tpu.memory_space<vmem>>, %arg8: memref<1x32xf32, #tpu.memory_space<vmem>>, %arg9: memref<16x32xf32, #tpu.memory_space<vmem>>, %arg10: memref<16x32xf32, #tpu.memory_space<vmem>>) attributes {dimension_semantics = [#tpu.dimension_semantics<parallel>, #tpu.dimension_semantics<parallel>, #tpu.dimension_semantics<arbitrary>], iteration_bounds = array<i64: 1, 1, 1>, scalar_prefetch = 0 : i64, scratch_operands = 1 : i64, tpu.core_type = #tpu.core_type<tc>, window_params = [{transform_indices = @transform_0, window_bounds = array<i64: 16, 32>}, {transform_indices = @transform_1, window_bounds = array<i64: 32, 32>}, {transform_indices = @transform_2, window_bounds = array<i64: 1, 32>}, {transform_indices = @transform_3, window_bounds = array<i64: 16, 32>}, {transform_indices = @transform_4, window_bounds = array<i64: 1, 32>}, {transform_indices = @transform_5, window_bounds = array<i64: 1, 32>}, {transform_indices = @transform_6, window_bounds = array<i64: 16, 32>}]} {
    %c0_i32 = arith.constant 0 : i32
    %0 = arith.cmpi eq, %arg2, %c0_i32 : i32
    %1 = arith.extui %0 : i1 to i32
    %c0_i32_0 = arith.constant 0 : i32
    %2 = arith.cmpi ne, %1, %c0_i32_0 : i32
    scf.if %2 {
      %cst_10 = arith.constant 0.000000e+00 : f32
      %12 = vector.broadcast %cst_10 : f32 to vector<16x32xf32>
      %c0_11 = arith.constant 0 : index
      %c0_12 = arith.constant 0 : index
      %13 = vector.load %arg10[%c0_11, %c0_12] : memref<16x32xf32, #tpu.memory_space<vmem>>, vector<16x32xf32>
      tpu.vector_store %arg10[%c0_11, %c0_12], %12 {strides = array<i32>} : memref<16x32xf32, #tpu.memory_space<vmem>>, vector<16x32xf32>,
    } else {
    }
    %c0 = arith.constant 0 : index
    %c0_1 = arith.constant 0 : index
    %3 = vector.load %arg10[%c0, %c0_1] : memref<16x32xf32, #tpu.memory_space<vmem>>, vector<16x32xf32>
    %c0_2 = arith.constant 0 : index
    %c0_3 = arith.constant 0 : index
    %4 = vector.load %arg3[%c0_2, %c0_3] : memref<16x32xf32, #tpu.memory_space<vmem>>, vector<16x32xf32>
    %c0_4 = arith.constant 0 : index
    %c0_5 = arith.constant 0 : index
    %5 = vector.load %arg4[%c0_4, %c0_5] : memref<32x32xf32, #tpu.memory_space<vmem>>, vector<32x32xf32>
    %cst = arith.constant dense<0.000000e+00> : vector<16x32xf32>
    %6 = tpu.matmul %4, %5, %cst {dimension_numbers = #tpu.dot_dimension_numbers<[1], [0], [0], [1], [0, 0, 1, 1], [], []>} : vector<16x32xf32>, vector<32x32xf32>, vector<16x32xf32> -> vector<16x32xf32>
    %7 = arith.addf %3, %6 : vector<16x32xf32>
    %c0_6 = arith.constant 0 : index
    %c0_7 = arith.constant 0 : index
    %8 = vector.load %arg10[%c0_6, %c0_7] : memref<16x32xf32, #tpu.memory_space<vmem>>, vector<16x32xf32>
    tpu.vector_store %arg10[%c0_6, %c0_7], %7 {strides = array<i32>} : memref<16x32xf32, #tpu.memory_space<vmem>>, vector<16x32xf32>,
    %c0_i32_8 = arith.constant 0 : i32
    %9 = arith.cmpi eq, %arg2, %c0_i32_8 : i32
    %10 = arith.extui %9 : i1 to i32
    %c0_i32_9 = arith.constant 0 : i32
    %11 = arith.cmpi ne, %10, %c0_i32_9 : i32
    scf.if %11 {
      %c0_10 = arith.constant 0 : index
      %c0_11 = arith.constant 0 : index
      %12 = vector.load %arg10[%c0_10, %c0_11] : memref<16x32xf32, #tpu.memory_space<vmem>>, vector<16x32xf32>
      %c0_12 = arith.constant 0 : index
      %c0_13 = arith.constant 0 : index
      %13 = vector.load %arg5[%c0_12, %c0_13] : memref<1x32xf32, #tpu.memory_space<vmem>>, vector<1x32xf32>
      %14 = vector.broadcast %13 : vector<1x32xf32> to vector<16x32xf32>
      %15 = arith.addf %12, %14 : vector<16x32xf32>
      %c0_14 = arith.constant 0 : index
      %c0_15 = arith.constant 0 : index
      %16 = vector.load %arg6[%c0_14, %c0_15] : memref<16x32xf32, #tpu.memory_space<vmem>>, vector<16x32xf32>
      %17 = arith.addf %15, %16 : vector<16x32xf32>
      %cst_16 = arith.constant dense<0.000000e+00> : vector<16xf32>
      %18 = vector.multi_reduction <add>, %17, %cst_16 [1] : vector<16x32xf32> to vector<16xf32>
      %19 = vector.shape_cast %18 : vector<16xf32> to vector<16x1xf32>
      %cst_17 = arith.constant 3.200000e+01 : f32
      %20 = vector.broadcast %cst_17 : f32 to vector<16x1xf32>
      %21 = arith.divf %19, %20 : vector<16x1xf32>
      %22 = vector.broadcast %21 : vector<16x1xf32> to vector<16x32xf32>
      %23 = arith.subf %17, %22 : vector<16x32xf32>
      %24 = arith.mulf %23, %23 : vector<16x32xf32>
      %cst_18 = arith.constant dense<0.000000e+00> : vector<16xf32>
      %25 = vector.multi_reduction <add>, %24, %cst_18 [1] : vector<16x32xf32> to vector<16xf32>
      %26 = vector.shape_cast %25 : vector<16xf32> to vector<16x1xf32>
      %cst_19 = arith.constant 3.200000e+01 : f32
      %27 = vector.broadcast %cst_19 : f32 to vector<16x1xf32>
      %28 = arith.divf %26, %27 : vector<16x1xf32>
      %cst_20 = arith.constant 9.99999974E-6 : f32
      %29 = vector.broadcast %cst_20 : f32 to vector<16x1xf32>
      %30 = arith.addf %28, %29 : vector<16x1xf32>
      %31 = math.rsqrt %30 : vector<16x1xf32>
      %32 = vector.broadcast %31 : vector<16x1xf32> to vector<16x32xf32>
      %33 = arith.mulf %23, %32 : vector<16x32xf32>
      %c0_21 = arith.constant 0 : index
      %c0_22 = arith.constant 0 : index
      %34 = vector.load %arg7[%c0_21, %c0_22] : memref<1x32xf32, #tpu.memory_space<vmem>>, vector<1x32xf32>
      %35 = vector.broadcast %34 : vector<1x32xf32> to vector<16x32xf32>
      %36 = arith.mulf %33, %35 : vector<16x32xf32>
      %c0_23 = arith.constant 0 : index
      %c0_24 = arith.constant 0 : index
      %37 = vector.load %arg8[%c0_23, %c0_24] : memref<1x32xf32, #tpu.memory_space<vmem>>, vector<1x32xf32>
      %38 = vector.broadcast %37 : vector<1x32xf32> to vector<16x32xf32>
      %39 = arith.addf %36, %38 : vector<16x32xf32>
      %c0_25 = arith.constant 0 : index
      %c0_26 = arith.constant 0 : index
      %40 = vector.load %arg9[%c0_25, %c0_26] : memref<16x32xf32, #tpu.memory_space<vmem>>, vector<16x32xf32>
      tpu.vector_store %arg9[%c0_25, %c0_26], %39 {strides = array<i32>} : memref<16x32xf32, #tpu.memory_space<vmem>>, vector<16x32xf32>,
    } else {
    }
    return
  }
  func.func @transform_0(%arg0: i32, %arg1: i32, %arg2: i32) -> (i32, i32) {
    %c0_i32 = arith.constant 0 : i32
    return %arg0, %arg2 : i32, i32
  }
  func.func @transform_1(%arg0: i32, %arg1: i32, %arg2: i32) -> (i32, i32) {
    %c0_i32 = arith.constant 0 : i32
    return %arg2, %arg1 : i32, i32
  }
  func.func @transform_2(%arg0: i32, %arg1: i32, %arg2: i32) -> (i32, i32) {
    %c0_i32 = arith.constant 0 : i32
    %c0_i32_0 = arith.constant 0 : i32
    return %c0_i32, %arg1 : i32, i32
  }
  func.func @transform_3(%arg0: i32, %arg1: i32, %arg2: i32) -> (i32, i32) {
    %c0_i32 = arith.constant 0 : i32
    return %arg0, %arg1 : i32, i32
  }
  func.func @transform_4(%arg0: i32, %arg1: i32, %arg2: i32) -> (i32, i32) {
    %c0_i32 = arith.constant 0 : i32
    %c0_i32_0 = arith.constant 0 : i32
    return %c0_i32, %arg1 : i32, i32
  }
  func.func @transform_5(%arg0: i32, %arg1: i32, %arg2: i32) -> (i32, i32) {
    %c0_i32 = arith.constant 0 : i32
    %c0_i32_0 = arith.constant 0 : i32
    return %c0_i32, %arg1 : i32, i32
  }
  func.func @transform_6(%arg0: i32, %arg1: i32, %arg2: i32) -> (i32, i32) {
    %c0_i32 = arith.constant 0 : i32
    return %arg0, %arg1 : i32, i32
  }
}

</mosaic_0001>

<llo_original>
// kernel: transformer_block.7
$region0: #{transformer_block.7}
  #allocation0 [shape = 'u32[]', space=smem, size = 0x4, offset = 0x4, fixed_abs, tag = 'smem constant byte address 0x4 - core index']
  #allocation1 [shape = 'u32[144,128]{1,0:T(1,128)}', space=vmem, size = 0x12000, scoped, tag = 'internal scratch']
  %s0 = inlined_call_operand.vmem [shape: f32[16,32], index: 0, kind: input, shape index: {}]
  %s1 = inlined_call_operand.vmem [shape: f32[32,128], index: 1, kind: input, shape index: {}]
  %s2 = inlined_call_operand.vmem [shape: f32[1,128], index: 2, kind: input, shape index: {}]
  %s3 = inlined_call_operand.vmem [shape: f32[128,32], index: 3, kind: input, shape index: {}]
  %s4 = inlined_call_operand.vmem [shape: f32[1,32], index: 4, kind: input, shape index: {}]
  %s5 = inlined_call_operand.vmem [shape: f32[1,32], index: 5, kind: input, shape index: {}]
  %s6 = inlined_call_operand.vmem [shape: f32[1,32], index: 6, kind: input, shape index: {}]
  %s7 = inlined_call_operand.hbm [shape: f32[16,32], index: 7, kind: output, shape index: {}]
  %s8 = sld [smem:[#allocation0]]
  $region38: #{transformer_block.7} parent=0
    _
  %s10 = ssub.s32 1, %s8
  %s11 = scalar_select 0, %s10, %s8
  $region1: #{transformer_block.7} parent=0
    #allocation2 [shape = 'u8[8192]{0}', space=vmem, size = 0x2000, scoped, tag = 'output window, operand 0, single buffered']
    #allocation3 [shape = 's32[1]{0}', space=sflag, size = 0x4, scoped, tag = 'scoped memory for transformer_block.7']
    %12 = vsyncpa [#allocation3], 0
    // Predicated region
    $region2: #{transformer_block.7} parent=1 // pred_check
      _
    $region3: #{transformer_block.7} parent=1 // pred_check_branch
      %14 = sbr.rel (0) target = $region5
    $region4: #{transformer_block.7} parent=1 // pred_region
      _
    $region5: #{transformer_block.7} parent=1 // pred_fallthru
      _
    // Predicated region
    $region6: #{transformer_block.7} parent=1 // pred_check
      _
    $region7: #{transformer_block.7} parent=1 // pred_check_branch
      %16 = sbr.rel (0) target = $region9
    $region8: #{transformer_block.7} parent=1 // pred_region
      _
    $region9: #{transformer_block.7} parent=1 // pred_fallthru
      _
    // Predicated region
    $region10: #{transformer_block.7} parent=1 // pred_check
      _
    $region11: #{transformer_block.7} parent=1 // pred_check_branch
      %18 = sbr.rel (0) target = $region13
    $region12: #{transformer_block.7} parent=1 // pred_region
      _
    $region13: #{transformer_block.7} parent=1 // pred_fallthru
      _
    // Predicated region
    $region14: #{transformer_block.7} parent=1 // pred_check
      _
    $region15: #{transformer_block.7} parent=1 // pred_check_branch
      %20 = sbr.rel (0) target = $region17
    $region16: #{transformer_block.7} parent=1 // pred_region
      _
    $region17: #{transformer_block.7} parent=1 // pred_fallthru
      _
    // Predicated region
    $region18: #{transformer_block.7} parent=1 // pred_check
      _
    $region19: #{transformer_block.7} parent=1 // pred_check_branch
      %22 = sbr.rel (0) target = $region21
    $region20: #{transformer_block.7} parent=1 // pred_region
      _
    $region21: #{transformer_block.7} parent=1 // pred_fallthru
      _
    // Predicated region
    $region22: #{transformer_block.7} parent=1 // pred_check
      _
    $region23: #{transformer_block.7} parent=1 // pred_check_branch
      %24 = sbr.rel (0) target = $region25
    $region24: #{transformer_block.7} parent=1 // pred_region
      _
    $region25: #{transformer_block.7} parent=1 // pred_fallthru
      _
    // Predicated region
    $region26: #{transformer_block.7} parent=1 // pred_check
      _
    $region27: #{transformer_block.7} parent=1 // pred_check_branch
      %26 = sbr.rel (0) target = $region29
    $region28: #{transformer_block.7} parent=1 // pred_region
      _
    $region29: #{transformer_block.7} parent=1 // pred_fallthru
      _
    %v27 = vld [vmem:[%s0] sm:$0xff]
    %v28 = vld [vmem:[%s0 + $0x8] sm:$0xff]
    %v29 = vld [vmem:[%s1] sm:$0xff]
    %v30 = vld [vmem:[%s1 + $0x8] sm:$0xff]
    %v31 = vld [vmem:[%s1 + $0x10] sm:$0xff]
    %v32 = vld [vmem:[%s1 + $0x18] sm:$0xff]
    %v33 = vld [vmem:[%s2] sm:$0x1]
    %v35 = vlaneseq
    %v36 = vshrl.u32 %v35, 7
    %v37 = vsub.s32 0, %v36
    %v38 = vrot.slane %v33, %v37
    %vm40 = vcmask 261120
    %v42 = vsel %vm40, %v27, 0
    %v45 = vsel %vm40, %v28, 0
    %47 = vmatprep.subr.mxu0 0.0
    %48 = vmatpush1.msra.mxu0 0.0
    %49 = vmatprep.subr.mxu0 0.0
    %50 = vmatpush1.msra.mxu0 0.0
    %51 = vmatprep.subr.mxu0 0.0
    %52 = vmatpush1.msra.mxu0 0.0
    %53 = vmatprep.subr.mxu0 0.0
    %54 = vmatpush1.msra.mxu0 0.0
    %55 = vmatprep.subr.mxu0 0.0
    %56 = vmatpush1.msra.mxu0 0.0
    %57 = vmatprep.subr.mxu0 0.0
    %58 = vmatpush1.msra.mxu0 0.0
    %59 = vmatprep.subr.mxu0 0.0
    %60 = vmatpush1.msra.mxu0 0.0
    %61 = vmatprep.subr.mxu0 0.0
    %62 = vmatpush1.msra.mxu0 0.0
    %63 = vmatprep.subr.mxu0 0.0
    %64 = vmatpush1.msra.mxu0 0.0
    %65 = vmatprep.subr.mxu0 0.0
    %66 = vmatpush1.msra.mxu0 0.0
    %67 = vmatprep.subr.mxu0 0.0
    %68 = vmatpush1.msra.mxu0 0.0
    %69 = vmatprep.subr.mxu0 0.0
    %70 = vmatpush1.msra.mxu0 0.0
    %71 = vmatprep.subr.mxu0 0.0
    %72 = vmatpush1.msra.mxu0 %v32
    %73 = vmatprep.subr.mxu0 0.0
    %74 = vmatpush1.msra.mxu0 %v31
    %75 = vmatprep.subr.mxu0 0.0
    %76 = vmatpush1.msra.mxu0 %v30
    %77 = vmatprep.subr.mxu0 0.0
    %78 = vmatpush1.msra.mxu0 %v29
    %79 = vmatprep.subr.mxu0 0.0
    %80 = vmatpush2.msra.mxu0 0.0
    %81 = vmatprep.subr.mxu0 0.0
    %82 = vmatpush2.msra.mxu0 0.0
    %83 = vmatprep.subr.mxu0 0.0
    %84 = vmatpush2.msra.mxu0 0.0
    %85 = vmatprep.subr.mxu0 0.0
    %86 = vmatpush2.msra.mxu0 0.0
    %87 = vmatprep.subr.mxu0 0.0
    %88 = vmatpush2.msra.mxu0 0.0
    %89 = vmatprep.subr.mxu0 0.0
    %90 = vmatpush2.msra.mxu0 0.0
    %91 = vmatprep.subr.mxu0 0.0
    %92 = vmatpush2.msra.mxu0 0.0
    %93 = vmatprep.subr.mxu0 0.0
    %94 = vmatpush2.msra.mxu0 0.0
    %95 = vmatprep.subr.mxu0 0.0
    %96 = vmatpush2.msra.mxu0 0.0
    %97 = vmatprep.subr.mxu0 0.0
    %98 = vmatpush2.msra.mxu0 0.0
    %99 = vmatprep.subr.mxu0 0.0
    %100 = vmatpush2.msra.mxu0 0.0
    %101 = vmatprep.subr.mxu0 0.0
    %102 = vmatpush2.msra.mxu0 0.0
    %103 = vmatprep.subr.mxu0 0.0
    %104 = vmatpush2.msra.mxu0 0.0
    %105 = vmatprep.subr.mxu0 0.0
    %106 = vmatpush2.msra.mxu0 0.0
    %107 = vmatprep.subr.mxu0 0.0
    %108 = vmatpush2.msra.mxu0 0.0
    %109 = vmatprep.subr.mxu0 0.0
    %110 = vmatpush2.msra.mxu0 0.0
    %111 = vmatprep.mubr.f32.mxu0 0.0
    %112 = vmatmul.mubr.f32.gmra.mxu0 %v42
    %v113 = vpop.f32.mrf.mxu0
    %v114 = vadd.f32 %v38, %v113
    %v115 = vpop.f32.mrf.mxu0
    %116 = vmatprep.mubr.f32.mxu0 0.0
    %117 = vmatmul.mubr.f32.gmra.mxu0 %v45
    %v118 = vpop.f32.mrf.mxu0
    %v119 = vadd.f32 %v38, %v118
    %v120 = vpop.f32.mrf.mxu0
    %121 = vdwg.mxu0
    %v122 = vmax.f32 %v114, 0.0
    %v123 = vmax.f32 %v119, 0.0
    %v124 = vld [vmem:[%s3] sm:$0xff]
    %v125 = vld [vmem:[%s3 + $0x8] sm:$0xff]
    %v126 = vld [vmem:[%s3 + $0x10] sm:$0xff]
    %v127 = vld [vmem:[%s3 + $0x18] sm:$0xff]
    %v128 = vld [vmem:[%s3 + $0x20] sm:$0xff]
    %v129 = vld [vmem:[%s3 + $0x28] sm:$0xff]
    %v130 = vld [vmem:[%s3 + $0x30] sm:$0xff]
    %v131 = vld [vmem:[%s3 + $0x38] sm:$0xff]
    %v132 = vld [vmem:[%s3 + $0x40] sm:$0xff]
    %v133 = vld [vmem:[%s3 + $0x48] sm:$0xff]
    %v134 = vld [vmem:[%s3 + $0x50] sm:$0xff]
    %v135 = vld [vmem:[%s3 + $0x58] sm:$0xff]
    %v136 = vld [vmem:[%s3 + $0x60] sm:$0xff]
    %v137 = vld [vmem:[%s3 + $0x68] sm:$0xff]
    %v138 = vld [vmem:[%s3 + $0x70] sm:$0xff]
    %v139 = vld [vmem:[%s3 + $0x78] sm:$0xff]
    %v140 = vld [vmem:[%s4] sm:$0x1]
    %v142 = vlaneseq
    %v143 = vshrl.u32 %v142, 7
    %v144 = vsub.s32 0, %v143
    %v145 = vrot.slane %v140, %v144
    %147 = vmatprep.subr.mxu0 0.0
    %148 = vmatpush1.msra.mxu0 %v139
    %149 = vmatprep.subr.mxu0 0.0
    %150 = vmatpush1.msra.mxu0 %v138
    %151 = vmatprep.subr.mxu0 0.0
    %152 = vmatpush1.msra.mxu0 %v137
    %153 = vmatprep.subr.mxu0 0.0
    %154 = vmatpush1.msra.mxu0 %v136
    %155 = vmatprep.subr.mxu0 0.0
    %156 = vmatpush1.msra.mxu0 %v135
    %157 = vmatprep.subr.mxu0 0.0
    %158 = vmatpush1.msra.mxu0 %v134
    %159 = vmatprep.subr.mxu0 0.0
    %160 = vmatpush1.msra.mxu0 %v133
    %161 = vmatprep.subr.mxu0 0.0
    %162 = vmatpush1.msra.mxu0 %v132
    %163 = vmatprep.subr.mxu0 0.0
    %164 = vmatpush1.msra.mxu0 %v131
    %165 = vmatprep.subr.mxu0 0.0
    %166 = vmatpush1.msra.mxu0 %v130
    %167 = vmatprep.subr.mxu0 0.0
    %168 = vmatpush1.msra.mxu0 %v129
    %169 = vmatprep.subr.mxu0 0.0
    %170 = vmatpush1.msra.mxu0 %v128
    %171 = vmatprep.subr.mxu0 0.0
    %172 = vmatpush1.msra.mxu0 %v127
    %173 = vmatprep.subr.mxu0 0.0
    %174 = vmatpush1.msra.mxu0 %v126
    %175 = vmatprep.subr.mxu0 0.0
    %176 = vmatpush1.msra.mxu0 %v125
    %177 = vmatprep.subr.mxu0 0.0
    %178 = vmatpush1.msra.mxu0 %v124
    %179 = vmatprep.subr.mxu0 0.0
    %180 = vmatpush2.msra.mxu0 0.0
    %181 = vmatprep.subr.mxu0 0.0
    %182 = vmatpush2.msra.mxu0 0.0
    %183 = vmatprep.subr.mxu0 0.0
    %184 = vmatpush2.msra.mxu0 0.0
    %185 = vmatprep.subr.mxu0 0.0
    %186 = vmatpush2.msra.mxu0 0.0
    %187 = vmatprep.subr.mxu0 0.0
    %188 = vmatpush2.msra.mxu0 0.0
    %189 = vmatprep.subr.mxu0 0.0
    %190 = vmatpush2.msra.mxu0 0.0
    %191 = vmatprep.subr.mxu0 0.0
    %192 = vmatpush2.msra.mxu0 0.0
    %193 = vmatprep.subr.mxu0 0.0
    %194 = vmatpush2.msra.mxu0 0.0
    %195 = vmatprep.subr.mxu0 0.0
    %196 = vmatpush2.msra.mxu0 0.0
    %197 = vmatprep.subr.mxu0 0.0
    %198 = vmatpush2.msra.mxu0 0.0
    %199 = vmatprep.subr.mxu0 0.0
    %200 = vmatpush2.msra.mxu0 0.0
    %201 = vmatprep.subr.mxu0 0.0
    %202 = vmatpush2.msra.mxu0 0.0
    %203 = vmatprep.subr.mxu0 0.0
    %204 = vmatpush2.msra.mxu0 0.0
    %205 = vmatprep.subr.mxu0 0.0
    %206 = vmatpush2.msra.mxu0 0.0
    %207 = vmatprep.subr.mxu0 0.0
    %208 = vmatpush2.msra.mxu0 0.0
    %209 = vmatprep.subr.mxu0 0.0
    %210 = vmatpush2.msra.mxu0 0.0
    %211 = vmatprep.mubr.f32.mxu0 0.0
    %212 = vmatmul.mubr.f32.gmra.mxu0 %v122
    %v213 = vpop.f32.mrf.mxu0
    %v214 = vadd.f32 %v145, %v213
    %v215 = vpop.f32.mrf.mxu0
    %216 = vmatprep.mubr.f32.mxu0 0.0
    %217 = vmatmul.mubr.f32.gmra.mxu0 %v123
    %v218 = vpop.f32.mrf.mxu0
    %v219 = vadd.f32 %v145, %v218
    %v220 = vpop.f32.mrf.mxu0
    %221 = vdwg.mxu0
    %v222 = vadd.f32 %v214, %v27
    %v223 = vadd.f32 %v219, %v28
    %v224 = vsel %vm40, %v222, 0.0
    %225 = vadd.xlane.f32.xlu0 %v224
    %v226 = vpop.xlane.xlu0 %225
    %v227 = vsel %vm40, %v223, 0.0
    %228 = vadd.xlane.f32.xlu0 %v227
    %v229 = vpop.xlane.xlu0 %228
    %v230 = vrcp.pop 32.0
    %v231 = vmul.f32 %v226, %v230
    %v232 = vmul.f32 %v229, %v230
    %v233 = vsub.f32 %v222, %v231
    %v234 = vsub.f32 %v223, %v232
    %v235 = vmul.f32 %v233, %v233
    %v236 = vmul.f32 %v234, %v234
    %v237 = vsel %vm40, %v235, 0.0
    %238 = vadd.xlane.f32.xlu0 %v237
    %v239 = vpop.xlane.xlu0 %238
    %v240 = vsel %vm40, %v236, 0.0
    %241 = vadd.xlane.f32.xlu0 %v240
    %v242 = vpop.xlane.xlu0 %241
    %v243 = vmul.f32 %v239, %v230
    %v244 = vmul.f32 %v242, %v230
    %v245 = vadd.f32 %v243, 1e-05
    %v246 = vadd.f32 %v244, 1e-05
    %v247 = vrsqrt.pop %v245
    %v248 = vrsqrt.pop %v246
    %v249 = vmul.f32 %v233, %v247
    %v250 = vmul.f32 %v234, %v248
    %v251 = vld [vmem:[%s5] sm:$0x1]
    %v253 = vlaneseq
    %v254 = vshrl.u32 %v253, 7
    %v255 = vsub.s32 0, %v254
    %v256 = vrot.slane %v251, %v255
    %v258 = vmul.f32 %v249, %v256
    %v259 = vmul.f32 %v250, %v256
    %v260 = vld [vmem:[%s6] sm:$0x1]
    %v262 = vlaneseq
    %v263 = vshrl.u32 %v262, 7
    %v264 = vsub.s32 0, %v263
    %v265 = vrot.slane %v260, %v264
    %v267 = vadd.f32 %v258, %v265
    %v268 = vadd.f32 %v259, %v265
    %269 = vst.msk [vmem:[#allocation2] sm:$0xff] %vm40, %v267
    %270 = vst.msk [vmem:[#allocation2 + $0x8] sm:$0xff] %vm40, %v268
    // Predicated region
    $region30: #{transformer_block.7} parent=1 // pred_check
      _
    $region31: #{transformer_block.7} parent=1 // pred_check_branch
      %272 = sbr.rel (0) target = $region33
    $region32: #{transformer_block.7} parent=1 // pred_region
      %s274 = ssub.s32 256, 256
      %275 = vsyncadd [#allocation3], %s274
      %s276 = sshll.u32 [#allocation2], 4
      %s277 = int_to_ptr.vmem [resolvable:$true] %s276
      %282 = dma.vmem_to_hbm [thread:$0]  %s277, 256, %s7, [#allocation3], 128, 128, 8
    $region33: #{transformer_block.7} parent=1 // pred_fallthru
      _
    // Predicated region
    $region34: #{transformer_block.7} parent=1 // pred_check
      _
    $region35: #{transformer_block.7} parent=1 // pred_check_branch
      %284 = sbr.rel (0) target = $region37
    $region36: #{transformer_block.7} parent=1 // pred_region
      %285 = dma.done [#allocation3], 256
    $region37: #{transformer_block.7} parent=1 // pred_fallthru
      _
    %286 = vsyncpa [#allocation3], 1

// kernel: transformer_block.4
$region0: #{transformer_block.4}
  #allocation0 [shape = 'u32[]', space=smem, size = 0x4, offset = 0x4, fixed_abs, tag = 'smem constant byte address 0x4 - core index']
  #allocation1 [shape = 'u32[144,128]{1,0:T(1,128)}', space=vmem, size = 0x12000, scoped, tag = 'internal scratch']
  #allocation2 [shape = 'f32[16,96]{1,0:T(8,128)}', space=vmem, size = 0x2000, scoped, tag = 'scratch operand']
  %s0 = inlined_call_operand.vmem [shape: f32[16,32], index: 0, kind: input, shape index: {}]
  %s1 = inlined_call_operand.hbm [shape: f32[32,96], index: 1, kind: input, shape index: {}]
  %s2 = inlined_call_operand.vmem [shape: f32[1,96], index: 2, kind: input, shape index: {}]
  %s3 = inlined_call_operand.vmem [shape: f32[16,96], index: 3, kind: output, shape index: {}]
  %s4 = sld [smem:[#allocation0]]
  $region34: #{transformer_block.4} parent=0
    _
  %s6 = ssub.s32 1, %s4
  %s7 = scalar_select 0, %s6, %s4
  $region1: #{transformer_block.4} parent=0
    #allocation3 [shape = 'u8[16384]{0}', space=vmem, size = 0x4000, scoped, tag = 'input window, operand 1, single buffered']
    #allocation4 [shape = 's32[1]{0}', space=sflag, size = 0x4, scoped, tag = 'scoped memory for transformer_block.4']
    %8 = vsyncpa [#allocation4], 0
    // Predicated region
    $region2: #{transformer_block.4} parent=1 // pred_check
      _
    $region3: #{transformer_block.4} parent=1 // pred_check_branch
      %10 = sbr.rel (0) target = $region5
    $region4: #{transformer_block.4} parent=1 // pred_region
      _
    $region5: #{transformer_block.4} parent=1 // pred_fallthru
      _
    // Predicated region
    $region6: #{transformer_block.4} parent=1 // pred_check
      _
    $region7: #{transformer_block.4} parent=1 // pred_check_branch
      %12 = sbr.rel (0) target = $region9
    $region8: #{transformer_block.4} parent=1 // pred_region
      %s14 = ssub.s32 512, 512
      %15 = vsyncadd [#allocation4], %s14
      %s16 = sshll.u32 [#allocation3], 4
      %s17 = int_to_ptr.vmem [resolvable:$true] %s16
      %22 = dma.hbm_to_vmem [thread:$0]  %s1, 512, %s17, [#allocation4], 128, 128, 8
    $region9: #{transformer_block.4} parent=1 // pred_fallthru
      _
    // Predicated region
    $region10: #{transformer_block.4} parent=1 // pred_check
      _
    $region11: #{transformer_block.4} parent=1 // pred_check_branch
      %24 = sbr.rel (0) target = $region13
    $region12: #{transformer_block.4} parent=1 // pred_region
      _
    $region13: #{transformer_block.4} parent=1 // pred_fallthru
      _
    // Predicated region
    $region14: #{transformer_block.4} parent=1 // pred_check
      _
    $region15: #{transformer_block.4} parent=1 // pred_check_branch
      %26 = sbr.rel (0) target = $region17
    $region16: #{transformer_block.4} parent=1 // pred_region
      %27 = dma.done [#allocation4], 512
    $region17: #{transformer_block.4} parent=1 // pred_fallthru
      _
    %p28 = scmp.eq.s32.totalorder 0, 0
    // Predicated region
    $region18: #{transformer_block.4} parent=1 // pred_check
      %p29 = pneg %p28
    $region19: #{transformer_block.4} parent=1 // pred_check_branch
      %31 = sbr.rel (%p29) target = $region21
    $region20: #{transformer_block.4} parent=1 // pred_region
      %vm32 = vcmask 785408
      %33 = vst.msk [vmem:[#allocation2] sm:$0xff] %vm32, 0.0
      %34 = vst.msk [vmem:[#allocation2 + $0x8] sm:$0xff] %vm32, 0.0
    $region21: #{transformer_block.4} parent=1 // pred_fallthru
      _
    %v35 = vld [vmem:[#allocation2] sm:$0xff]
    %v36 = vld [vmem:[#allocation2 + $0x8] sm:$0xff]
    %v37 = vld [vmem:[%s0] sm:$0xff]
    %v38 = vld [vmem:[%s0 + $0x8] sm:$0xff]
    %v39 = vld [vmem:[#allocation3] sm:$0xff]
    %v40 = vld [vmem:[#allocation3 + $0x8] sm:$0xff]
    %v41 = vld [vmem:[#allocation3 + $0x10] sm:$0xff]
    %v42 = vld [vmem:[#allocation3 + $0x18] sm:$0xff]
    %vm43 = vcmask 261120
    %v45 = vsel %vm43, %v37, 0
    %v48 = vsel %vm43, %v38, 0
    %50 = vmatprep.subr.mxu0 0.0
    %51 = vmatpush1.msra.mxu0 0.0
    %52 = vmatprep.subr.mxu0 0.0
    %53 = vmatpush1.msra.mxu0 0.0
    %54 = vmatprep.subr.mxu0 0.0
    %55 = vmatpush1.msra.mxu0 0.0
    %56 = vmatprep.subr.mxu0 0.0
    %57 = vmatpush1.msra.mxu0 0.0
    %58 = vmatprep.subr.mxu0 0.0
    %59 = vmatpush1.msra.mxu0 0.0
    %60 = vmatprep.subr.mxu0 0.0
    %61 = vmatpush1.msra.mxu0 0.0
    %62 = vmatprep.subr.mxu0 0.0
    %63 = vmatpush1.msra.mxu0 0.0
    %64 = vmatprep.subr.mxu0 0.0
    %65 = vmatpush1.msra.mxu0 0.0
    %66 = vmatprep.subr.mxu0 0.0
    %67 = vmatpush1.msra.mxu0 0.0
    %68 = vmatprep.subr.mxu0 0.0
    %69 = vmatpush1.msra.mxu0 0.0
    %70 = vmatprep.subr.mxu0 0.0
    %71 = vmatpush1.msra.mxu0 0.0
    %72 = vmatprep.subr.mxu0 0.0
    %73 = vmatpush1.msra.mxu0 0.0
    %74 = vmatprep.subr.mxu0 0.0
    %75 = vmatpush1.msra.mxu0 %v42
    %76 = vmatprep.subr.mxu0 0.0
    %77 = vmatpush1.msra.mxu0 %v41
    %78 = vmatprep.subr.mxu0 0.0
    %79 = vmatpush1.msra.mxu0 %v40
    %80 = vmatprep.subr.mxu0 0.0
    %81 = vmatpush1.msra.mxu0 %v39
    %82 = vmatprep.subr.mxu0 0.0
    %83 = vmatpush2.msra.mxu0 0.0
    %84 = vmatprep.subr.mxu0 0.0
    %85 = vmatpush2.msra.mxu0 0.0
    %86 = vmatprep.subr.mxu0 0.0
    %87 = vmatpush2.msra.mxu0 0.0
    %88 = vmatprep.subr.mxu0 0.0
    %89 = vmatpush2.msra.mxu0 0.0
    %90 = vmatprep.subr.mxu0 0.0
    %91 = vmatpush2.msra.mxu0 0.0
    %92 = vmatprep.subr.mxu0 0.0
    %93 = vmatpush2.msra.mxu0 0.0
    %94 = vmatprep.subr.mxu0 0.0
    %95 = vmatpush2.msra.mxu0 0.0
    %96 = vmatprep.subr.mxu0 0.0
    %97 = vmatpush2.msra.mxu0 0.0
    %98 = vmatprep.subr.mxu0 0.0
    %99 = vmatpush2.msra.mxu0 0.0
    %100 = vmatprep.subr.mxu0 0.0
    %101 = vmatpush2.msra.mxu0 0.0
    %102 = vmatprep.subr.mxu0 0.0
    %103 = vmatpush2.msra.mxu0 0.0
    %104 = vmatprep.subr.mxu0 0.0
    %105 = vmatpush2.msra.mxu0 0.0
    %106 = vmatprep.subr.mxu0 0.0
    %107 = vmatpush2.msra.mxu0 0.0
    %108 = vmatprep.subr.mxu0 0.0
    %109 = vmatpush2.msra.mxu0 0.0
    %110 = vmatprep.subr.mxu0 0.0
    %111 = vmatpush2.msra.mxu0 0.0
    %112 = vmatprep.subr.mxu0 0.0
    %113 = vmatpush2.msra.mxu0 0.0
    %114 = vmatprep.mubr.f32.mxu0 0.0
    %115 = vmatmul.mubr.f32.gmra.mxu0 %v45
    %v116 = vpop.f32.mrf.mxu0
    %v117 = vadd.f32 0.0, %v116
    %v118 = vpop.f32.mrf.mxu0
    %119 = vmatprep.mubr.f32.mxu0 0.0
    %120 = vmatmul.mubr.f32.gmra.mxu0 %v48
    %v121 = vpop.f32.mrf.mxu0
    %v122 = vadd.f32 0.0, %v121
    %v123 = vpop.f32.mrf.mxu0
    %124 = vdwg.mxu0
    %v125 = vadd.f32 %v35, %v117
    %v126 = vadd.f32 %v36, %v122
    %vm127 = vcmask 785408
    %128 = vst.msk [vmem:[#allocation2] sm:$0xff] %vm127, %v125
    %129 = vst.msk [vmem:[#allocation2 + $0x8] sm:$0xff] %vm127, %v126
    // Predicated region
    $region22: #{transformer_block.4} parent=1 // pred_check
      %p130 = pneg %p28
    $region23: #{transformer_block.4} parent=1 // pred_check_branch
      %132 = sbr.rel (%p130) target = $region25
    $region24: #{transformer_block.4} parent=1 // pred_region
      %v133 = vld [vmem:[#allocation2] sm:$0xff]
      %v134 = vld [vmem:[#allocation2 + $0x8] sm:$0xff]
      %v135 = vld [vmem:[%s2] sm:$0x1]
      %v137 = vlaneseq
      %v138 = vshrl.u32 %v137, 7
      %v139 = vsub.s32 0, %v138
      %v140 = vrot.slane %v135, %v139
      %v142 = vadd.f32 %v133, %v140
      %v143 = vadd.f32 %v134, %v140
      %144 = vst.msk [vmem:[%s3] sm:$0xff] %vm127, %v142
      %145 = vst.msk [vmem:[%s3 + $0x8] sm:$0xff] %vm127, %v143
    $region25: #{transformer_block.4} parent=1 // pred_fallthru
      _
    // Predicated region
    $region26: #{transformer_block.4} parent=1 // pred_check
      _
    $region27: #{transformer_block.4} parent=1 // pred_check_branch
      %147 = sbr.rel (0) target = $region29
    $region28: #{transformer_block.4} parent=1 // pred_region
      _
    $region29: #{transformer_block.4} parent=1 // pred_fallthru
      _
    // Predicated region
    $region30: #{transformer_block.4} parent=1 // pred_check
      _
    $region31: #{transformer_block.4} parent=1 // pred_check_branch
      %149 = sbr.rel (0) target = $region33
    $region32: #{transformer_block.4} parent=1 // pred_region
      _
    $region33: #{transformer_block.4} parent=1 // pred_fallthru
      _
    %150 = vsyncpa [#allocation4], 1

// kernel: transformer_block.5
$region0: #{transformer_block.5}
  #allocation0 [shape = 'u32[]', space=smem, size = 0x4, offset = 0x4, fixed_abs, tag = 'smem constant byte address 0x4 - core index']
  #allocation1 [shape = 'u32[144,128]{1,0:T(1,128)}', space=vmem, size = 0x12000, scoped, tag = 'internal scratch']
  #allocation2 [shape = 'f32[8,1]{1,0:T(8,128)}', space=vmem, size = 0x1000, scoped, tag = 'scratch operand']
  #allocation3 [shape = 'f32[8,1]{1,0:T(8,128)}', space=vmem, size = 0x1000, scoped, tag = 'scratch operand']
  #allocation4 [shape = 'f32[8,8]{1,0:T(8,128)}', space=vmem, size = 0x1000, scoped, tag = 'scratch operand']
  %s0 = inlined_call_operand.vmem [shape: f32[8,8,8], index: 0, kind: input, shape index: {}]
  %s1 = inlined_call_operand.vmem [shape: f32[8,8,8], index: 1, kind: input, shape index: {}]
  %s2 = inlined_call_operand.vmem [shape: f32[8,8,8], index: 2, kind: input, shape index: {}]
  %s3 = inlined_call_operand.vmem [shape: f32[8,8,8], index: 3, kind: output, shape index: {}]
  %s4 = sld [smem:[#allocation0]]
  $region53: #{transformer_block.5} parent=0
    _
  %s6 = ssub.s32 1, %s4
  %s7 = scalar_select 0, %s6, %s4
  loop: start=0, step=1, limit=10
  $region2: #{transformer_block.5} parent=0 // loop_pre_header
    _
  $region3: #{transformer_block.5} parent=0 // loop_header
    %s9 = sphi 0, %s13
    %p10 = scmp.ge.s32.totalorder %s9, 10
    %s16 = sphi 0, %s35
    %s17 = sphi 0, %s31
    %s18 = sphi 0, %s27
    %s19 = sphi 0, %s16
    %s20 = sphi 0, %s17
    %s21 = sphi 0, %s18
    %s22 = sphi 0, %s19
    %s23 = sphi 0, %s20
    %s24 = sphi 0, %s21
    %s40 = sphi 0, %s42
    %s43 = sphi 0, %s40
    %s44 = sphi 0, %s43
    %s60 = sphi 0, %s44
    %s68 = sphi 0, %s70
    %s71 = sphi 0, %s68
    %s72 = sphi 0, %s71
    %s88 = sphi 0, %s72
    %s96 = sphi 0, %s98
    %s99 = sphi 0, %s96
    %s100 = sphi 0, %s99
    %s116 = sphi 0, %s100
    %s124 = sphi 0, %s126
    %s127 = sphi 0, %s124
    %s128 = sphi 0, %s127
    %s144 = sphi 0, %s128
  $region4: #{transformer_block.5} parent=0 // loop_header_branch
    %12 = sbr.rel (%p10) target = $region8
  $region5: #{transformer_block.5} parent=0 // loop_body
    %s14 = ssub.s32 %s9, 1
    %s15 = ssub.s32 %s9, 2
    %s25 = sadd.s32 1, %s18
    %p26 = scmp.ge.s32.totalorder %s25, 1
    %s27 = scalar_select %p26, 0, %s25
    %s28 = sadd.s32 1, %s17
    %s29 = scalar_select %p26, %s28, %s17
    %p30 = scmp.ge.s32.totalorder %s29, 1
    %s31 = scalar_select %p30, 0, %s29
    %s32 = sadd.s32 1, %s16
    %s33 = scalar_select %p30, %s32, %s16
    %p34 = scmp.ge.s32.totalorder %s33, 8
    %s35 = scalar_select %p34, 0, %s33
    %s36 = ssub.s32 %s16, %s35
    %s37 = ssub.s32 %s17, %s31
    %s38 = sor.u32 %s36, %s37
    %p39 = scmp.eq.s32.totalorder %s38, 0
    %s41 = sadd.s32 %s40, 1
    %s42 = scalar_select %p39, %s40, %s41
    %p45 = pneg %p39
    %p46 = scmp.eq.s32.totalorder %s9, 7
    %p47 = por %p45, %p46
    %p48 = scmp.ne.s32.totalorder %s40, %s43
    %p49 = scmp.eq.s32.totalorder %s9, 0
    %p50 = por %p48, %p49
    %p51 = scmp.ne.s32.totalorder %s40, %s43
    %p52 = scmp.eq.s32.totalorder %s14, 7
    %p53 = por %p51, %p52
    %p54 = scmp.ne.s32.totalorder %s43, %s44
    %p55 = scmp.eq.s32.totalorder %s14, 0
    %p56 = por %p54, %p55
    %p57 = scmp.ne.s32.totalorder %s43, %s44
    %p58 = scmp.eq.s32.totalorder %s15, 7
    %p59 = por %p57, %p58
    %p61 = scmp.ne.s32.totalorder %s44, %s60
    %p62 = scmp.eq.s32.totalorder %s15, 0
    %p63 = por %p61, %p62
    %s64 = ssub.s32 %s16, %s35
    %s65 = ssub.s32 %s18, %s27
    %s66 = sor.u32 %s64, %s65
    %p67 = scmp.eq.s32.totalorder %s66, 0
    %s69 = sadd.s32 %s68, 1
    %s70 = scalar_select %p67, %s68, %s69
    %p73 = pneg %p67
    %p74 = scmp.eq.s32.totalorder %s9, 7
    %p75 = por %p73, %p74
    %p76 = scmp.ne.s32.totalorder %s68, %s71
    %p77 = scmp.eq.s32.totalorder %s9, 0
    %p78 = por %p76, %p77
    %p79 = scmp.ne.s32.totalorder %s68, %s71
    %p80 = scmp.eq.s32.totalorder %s14, 7
    %p81 = por %p79, %p80
    %p82 = scmp.ne.s32.totalorder %s71, %s72
    %p83 = scmp.eq.s32.totalorder %s14, 0
    %p84 = por %p82, %p83
    %p85 = scmp.ne.s32.totalorder %s71, %s72
    %p86 = scmp.eq.s32.totalorder %s15, 7
    %p87 = por %p85, %p86
    %p89 = scmp.ne.s32.totalorder %s72, %s88
    %p90 = scmp.eq.s32.totalorder %s15, 0
    %p91 = por %p89, %p90
    %s92 = ssub.s32 %s16, %s35
    %s93 = ssub.s32 %s18, %s27
    %s94 = sor.u32 %s92, %s93
    %p95 = scmp.eq.s32.totalorder %s94, 0
    %s97 = sadd.s32 %s96, 1
    %s98 = scalar_select %p95, %s96, %s97
    %p101 = pneg %p95
    %p102 = scmp.eq.s32.totalorder %s9, 7
    %p103 = por %p101, %p102
    %p104 = scmp.ne.s32.totalorder %s96, %s99
    %p105 = scmp.eq.s32.totalorder %s9, 0
    %p106 = por %p104, %p105
    %p107 = scmp.ne.s32.totalorder %s96, %s99
    %p108 = scmp.eq.s32.totalorder %s14, 7
    %p109 = por %p107, %p108
    %p110 = scmp.ne.s32.totalorder %s99, %s100
    %p111 = scmp.eq.s32.totalorder %s14, 0
    %p112 = por %p110, %p111
    %p113 = scmp.ne.s32.totalorder %s99, %s100
    %p114 = scmp.eq.s32.totalorder %s15, 7
    %p115 = por %p113, %p114
    %p117 = scmp.ne.s32.totalorder %s100, %s116
    %p118 = scmp.eq.s32.totalorder %s15, 0
    %p119 = por %p117, %p118
    %s120 = ssub.s32 %s16, %s35
    %s121 = ssub.s32 %s17, %s31
    %s122 = sor.u32 %s120, %s121
    %p123 = scmp.eq.s32.totalorder %s122, 0
    %s125 = sadd.s32 %s124, 1
    %s126 = scalar_select %p123, %s124, %s125
    %p129 = pneg %p123
    %p130 = scmp.eq.s32.totalorder %s9, 7
    %p131 = por %p129, %p130
    %p132 = scmp.ne.s32.totalorder %s124, %s127
    %p133 = scmp.eq.s32.totalorder %s9, 0
    %p134 = por %p132, %p133
    %p135 = scmp.ne.s32.totalorder %s124, %s127
    %p136 = scmp.eq.s32.totalorder %s14, 7
    %p137 = por %p135, %p136
    %p138 = scmp.ne.s32.totalorder %s127, %s128
    %p139 = scmp.eq.s32.totalorder %s14, 0
    %p140 = por %p138, %p139
    %p141 = scmp.ne.s32.totalorder %s127, %s128
    %p142 = scmp.eq.s32.totalorder %s15, 7
    %p143 = por %p141, %p142
    %p145 = scmp.ne.s32.totalorder %s128, %s144
    %p146 = scmp.eq.s32.totalorder %s15, 0
    %p147 = por %p145, %p146
    %p148 = scmp.le.s32.totalorder 1, %s9
    %p149 = scmp.lt.s32.totalorder %s9, 9
    %p150 = pnand %p148, %p149
    %p151 = pneg %p150
    // Predicated region
    $region9: #{transformer_block.5} parent=5 // pred_check
      _
    $region10: #{transformer_block.5} parent=5 // pred_check_branch
      %153 = sbr.rel (%p150) target = $region12
    $region11: #{transformer_block.5} parent=5 // pred_region
      %s154 = ssub.s32 %s9, 1
    $region12: #{transformer_block.5} parent=5 // pred_fallthru
      _
    %p155 = scmp.lt.s32.totalorder %s9, 8
    // Predicated region
    $region13: #{transformer_block.5} parent=5 // pred_check
      %p156 = pneg %p155
    $region14: #{transformer_block.5} parent=5 // pred_check_branch
      %158 = sbr.rel (%p156) target = $region16
    $region15: #{transformer_block.5} parent=5 // pred_region
      // Predicated region
      $region17: #{transformer_block.5} parent=15 // pred_check
        %p159 = pneg %p50
      $region18: #{transformer_block.5} parent=15 // pred_check_branch
        %161 = sbr.rel (%p159) target = $region20
      $region19: #{transformer_block.5} parent=15 // pred_region
        %p162 = scmp.lt.s32.totalorder %s16, 7
        %s163 = scalar_select %p162, %s16, 7
        %p164 = scmp.lt.s32.totalorder %s17, 0
        %s165 = scalar_select %p164, %s17, 0
        %s166 = sadd.s32 %s165, %s163
        %s167 = smul.addr %s166, 8
        %s168 = scalar_lea.vmem %s0, %s167
      $region20: #{transformer_block.5} parent=15 // pred_fallthru
        _
      // Predicated region
      $region21: #{transformer_block.5} parent=15 // pred_check
        %p169 = pneg %p78
      $region22: #{transformer_block.5} parent=15 // pred_check_branch
        %171 = sbr.rel (%p169) target = $region24
      $region23: #{transformer_block.5} parent=15 // pred_region
        %p172 = scmp.lt.s32.totalorder %s16, 7
        %s173 = scalar_select %p172, %s16, 7
        %p174 = scmp.lt.s32.totalorder %s18, 0
        %s175 = scalar_select %p174, %s18, 0
        %s176 = sadd.s32 %s175, %s173
        %s177 = smul.addr %s176, 8
        %s178 = scalar_lea.vmem %s1, %s177
      $region24: #{transformer_block.5} parent=15 // pred_fallthru
        _
      // Predicated region
      $region25: #{transformer_block.5} parent=15 // pred_check
        %p179 = pneg %p106
      $region26: #{transformer_block.5} parent=15 // pred_check_branch
        %181 = sbr.rel (%p179) target = $region28
      $region27: #{transformer_block.5} parent=15 // pred_region
        %p182 = scmp.lt.s32.totalorder %s16, 7
        %s183 = scalar_select %p182, %s16, 7
        %p184 = scmp.lt.s32.totalorder %s18, 0
        %s185 = scalar_select %p184, %s18, 0
        %s186 = sadd.s32 %s185, %s183
        %s187 = smul.addr %s186, 8
        %s188 = scalar_lea.vmem %s2, %s187
      $region28: #{transformer_block.5} parent=15 // pred_fallthru
        _
    $region16: #{transformer_block.5} parent=5 // pred_fallthru
      _
    %p189 = scmp.le.s32.totalorder 1, %s9
    %p190 = scmp.lt.s32.totalorder %s9, 9
    %p191 = pnand %p189, %p190
    %p192 = pneg %p191
    // Predicated region
    $region29: #{transformer_block.5} parent=5 // pred_check
      _
    $region30: #{transformer_block.5} parent=5 // pred_check_branch
      %194 = sbr.rel (%p191) target = $region32
    $region31: #{transformer_block.5} parent=5 // pred_region
      %s195 = ssub.s32 %s9, 1
      %p196 = scmp.lt.s32.totalorder %s19, 7
      %s197 = scalar_select %p196, %s19, 7
      %p198 = scmp.lt.s32.totalorder %s20, 0
      %s199 = scalar_select %p198, %s20, 0
      %s200 = sadd.s32 %s199, %s197
      %s201 = smul.addr %s200, 8
      %s202 = scalar_lea.vmem %s0, %s201
      %p203 = pneg %p56
      %p204 = pneg %p53
      %p205 = scmp.lt.s32.totalorder %s19, 7
      %s206 = scalar_select %p205, %s19, 7
      %p207 = scmp.lt.s32.totalorder %s21, 0
      %s208 = scalar_select %p207, %s21, 0
      %s209 = sadd.s32 %s208, %s206
      %s210 = smul.addr %s209, 8
      %s211 = scalar_lea.vmem %s1, %s210
      %p212 = pneg %p84
      %p213 = pneg %p81
      %p214 = scmp.lt.s32.totalorder %s19, 7
      %s215 = scalar_select %p214, %s19, 7
      %p216 = scmp.lt.s32.totalorder %s21, 0
      %s217 = scalar_select %p216, %s21, 0
      %s218 = sadd.s32 %s217, %s215
      %s219 = smul.addr %s218, 8
      %s220 = scalar_lea.vmem %s2, %s219
      %p221 = pneg %p112
      %p222 = pneg %p109
      %p223 = pneg %p140
      %p224 = pneg %p137
      %p225 = scmp.lt.s32.totalorder %s19, 7
      %s226 = scalar_select %p225, %s19, 7
      %p227 = scmp.lt.s32.totalorder %s20, 0
      %s228 = scalar_select %p227, %s20, 0
      %s229 = sadd.s32 %s228, %s226
      %s230 = smul.addr %s229, 8
      %s231 = scalar_lea.vmem %s3, %s230
      %p232 = scmp.lt.s32.totalorder %s19, 7
      %s233 = scalar_select %p232, %s19, 7
      %p234 = scmp.lt.s32.totalorder %s20, 0
      %s235 = scalar_select %p234, %s20, 0
      %s236 = sadd.s32 %s235, %s233
      %s237 = smul.addr %s236, 8
      %s238 = scalar_lea.vmem %s0, %s237
      %p239 = scmp.lt.s32.totalorder %s19, 7
      %s240 = scalar_select %p239, %s19, 7
      %p241 = scmp.lt.s32.totalorder %s21, 0
      %s242 = scalar_select %p241, %s21, 0
      %s243 = sadd.s32 %s242, %s240
      %s244 = smul.addr %s243, 8
      %s245 = scalar_lea.vmem %s1, %s244
      %p246 = scmp.lt.s32.totalorder %s19, 7
      %s247 = scalar_select %p246, %s19, 7
      %p248 = scmp.lt.s32.totalorder %s21, 0
      %s249 = scalar_select %p248, %s21, 0
      %s250 = sadd.s32 %s249, %s247
      %s251 = smul.addr %s250, 8
      %s252 = scalar_lea.vmem %s2, %s251
      %p253 = scmp.lt.s32.totalorder %s19, 7
      %s254 = scalar_select %p253, %s19, 7
      %p255 = scmp.lt.s32.totalorder %s20, 0
      %s256 = scalar_select %p255, %s20, 0
      %s257 = sadd.s32 %s256, %s254
      %s258 = smul.addr %s257, 8
      %s259 = scalar_lea.vmem %s3, %s258
      %p260 = scmp.eq.s32.totalorder %s21, 0
      // Predicated region
      $region33: #{transformer_block.5} parent=31 // pred_check
        %p261 = pneg %p260
      $region34: #{transformer_block.5} parent=31 // pred_check_branch
        %263 = sbr.rel (%p261) target = $region36
      $region35: #{transformer_block.5} parent=31 // pred_region
        %vm264 = vcmask 7168
        %265 = vst.msk [vmem:[#allocation2] sm:$0xff] %vm264, -inf
        %266 = vst.msk [vmem:[#allocation3] sm:$0xff] %vm264, 0.0
        %vm267 = vcmask 64512
        %268 = vst.msk [vmem:[#allocation4] sm:$0xff] %vm267, 0.0
      $region36: #{transformer_block.5} parent=31 // pred_fallthru
        _
      %v269 = vld [vmem:[%s238] sm:$0xff]
      %v270 = vmul.f32 %v269, 0.35355338
      %v271 = vld [vmem:[%s245] sm:$0xff]
      %vm272 = vcmask 64512
      %v274 = vsel %vm272, %v270, 0
      %v277 = vsel %vm272, %v271, 0
      %279 = vmatprep.subr.mxu0 0.0
      %280 = vmatpush1.xpose.msra.mxu0 0.0
      %281 = vmatprep.subr.mxu0 0.0
      %282 = vmatpush1.xpose.msra.mxu0 0.0
      %283 = vmatprep.subr.mxu0 0.0
      %284 = vmatpush1.xpose.msra.mxu0 0.0
      %285 = vmatprep.subr.mxu0 0.0
      %286 = vmatpush1.xpose.msra.mxu0 0.0
      %287 = vmatprep.subr.mxu0 0.0
      %288 = vmatpush1.xpose.msra.mxu0 0.0
      %289 = vmatprep.subr.mxu0 0.0
      %290 = vmatpush1.xpose.msra.mxu0 0.0
      %291 = vmatprep.subr.mxu0 0.0
      %292 = vmatpush1.xpose.msra.mxu0 0.0
      %293 = vmatprep.subr.mxu0 0.0
      %294 = vmatpush1.xpose.msra.mxu0 0.0
      %295 = vmatprep.subr.mxu0 0.0
      %296 = vmatpush1.xpose.msra.mxu0 0.0
      %297 = vmatprep.subr.mxu0 0.0
      %298 = vmatpush1.xpose.msra.mxu0 0.0
      %299 = vmatprep.subr.mxu0 0.0
      %300 = vmatpush1.xpose.msra.mxu0 0.0
      %301 = vmatprep.subr.mxu0 0.0
      %302 = vmatpush1.xpose.msra.mxu0 0.0
      %303 = vmatprep.subr.mxu0 0.0
      %304 = vmatpush1.xpose.msra.mxu0 0.0
      %305 = vmatprep.subr.mxu0 0.0
      %306 = vmatpush1.xpose.msra.mxu0 0.0
      %307 = vmatprep.subr.mxu0 0.0
      %308 = vmatpush1.xpose.msra.mxu0 0.0
      %309 = vmatprep.subr.mxu0 0.0
      %310 = vmatpush1.xpose.msra.mxu0 %v277
      %311 = vmatprep.subr.mxu0 0.0
      %312 = vmatpush2.xpose.msra.mxu0 0.0
      %313 = vmatprep.subr.mxu0 0.0
      %314 = vmatpush2.xpose.msra.mxu0 0.0
      %315 = vmatprep.subr.mxu0 0.0
      %316 = vmatpush2.xpose.msra.mxu0 0.0
      %317 = vmatprep.subr.mxu0 0.0
      %318 = vmatpush2.xpose.msra.mxu0 0.0
      %319 = vmatprep.subr.mxu0 0.0
      %320 = vmatpush2.xpose.msra.mxu0 0.0
      %321 = vmatprep.subr.mxu0 0.0
      %322 = vmatpush2.xpose.msra.mxu0 0.0
      %323 = vmatprep.subr.mxu0 0.0
      %324 = vmatpush2.xpose.msra.mxu0 0.0
      %325 = vmatprep.subr.mxu0 0.0
      %326 = vmatpush2.xpose.msra.mxu0 0.0
      %327 = vmatprep.subr.mxu0 0.0
      %328 = vmatpush2.xpose.msra.mxu0 0.0
      %329 = vmatprep.subr.mxu0 0.0
      %330 = vmatpush2.xpose.msra.mxu0 0.0
      %331 = vmatprep.subr.mxu0 0.0
      %332 = vmatpush2.xpose.msra.mxu0 0.0
      %333 = vmatprep.subr.mxu0 0.0
      %334 = vmatpush2.xpose.msra.mxu0 0.0
      %335 = vmatprep.subr.mxu0 0.0
      %336 = vmatpush2.xpose.msra.mxu0 0.0
      %337 = vmatprep.subr.mxu0 0.0
      %338 = vmatpush2.xpose.msra.mxu0 0.0
      %339 = vmatprep.subr.mxu0 0.0
      %340 = vmatpush2.xpose.msra.mxu0 0.0
      %341 = vmatprep.subr.mxu0 0.0
      %342 = vmatpush2.xpose.msra.mxu0 0.0
      %343 = vmatprep.mubr.f32.mxu0 0.0
      %344 = vmatmul.mubr.f32.gmra.mxu0 %v274
      %v345 = vpop.f32.mrf.mxu0
      %v346 = vadd.f32 0.0, %v345
      %v347 = vpop.f32.mrf.mxu0
      %348 = vdwg.mxu0
      %v349 = vld [vmem:[#allocation2] sm:$0xff]
      %v350 = vsel %vm272, %v346, -inf
      %351 = vmax.xlane.f32.xlu0 %v350
      %v352 = vpop.xlane.xlu0 %351
      %v353 = vmax.f32 %v349, %v352
      %v354 = vsub.f32 %v349, %v353
      %v355 = vmul.f32 %v354, 1.442695
      %v356 = vpow.pop %v355
      %358 = vset.pattern.permute.xlu0 0
      %359 = vperm.xlu0 %358, %v353
      %v360 = vpop.permute.xlu0 %359
      %v362 = vsub.f32 %v346, %v360
      %v363 = vmul.f32 %v362, 1.442695
      %v364 = vpow.pop %v363
      %v365 = vld [vmem:[#allocation3] sm:$0xff]
      %v366 = vmul.f32 %v356, %v365
      %v367 = vsel %vm272, %v364, 0.0
      %368 = vadd.xlane.f32.xlu0 %v367
      %v369 = vpop.xlane.xlu0 %368
      %v370 = vadd.f32 %v366, %v369
      %vm371 = vcmask 7168
      %372 = vst.msk [vmem:[#allocation3] sm:$0xff] %vm371, %v370
      %v373 = vld [vmem:[#allocation4] sm:$0xff]
      %375 = vset.pattern.permute.xlu0 0
      %376 = vperm.xlu0 %375, %v356
      %v377 = vpop.permute.xlu0 %376
      %v379 = vmul.f32 %v377, %v373
      %v380 = vld [vmem:[%s252] sm:$0xff]
      %v382 = vsel %vm272, %v364, 0
      %384 = vmatprep.subr.mxu0 0.0
      %385 = vmatpush1.msra.mxu0 0.0
      %386 = vmatprep.subr.mxu0 0.0
      %387 = vmatpush1.msra.mxu0 0.0
      %388 = vmatprep.subr.mxu0 0.0
      %389 = vmatpush1.msra.mxu0 0.0
      %390 = vmatprep.subr.mxu0 0.0
      %391 = vmatpush1.msra.mxu0 0.0
      %392 = vmatprep.subr.mxu0 0.0
      %393 = vmatpush1.msra.mxu0 0.0
      %394 = vmatprep.subr.mxu0 0.0
      %395 = vmatpush1.msra.mxu0 0.0
      %396 = vmatprep.subr.mxu0 0.0
      %397 = vmatpush1.msra.mxu0 0.0
      %398 = vmatprep.subr.mxu0 0.0
      %399 = vmatpush1.msra.mxu0 0.0
      %400 = vmatprep.subr.mxu0 0.0
      %401 = vmatpush1.msra.mxu0 0.0
      %402 = vmatprep.subr.mxu0 0.0
      %403 = vmatpush1.msra.mxu0 0.0
      %404 = vmatprep.subr.mxu0 0.0
      %405 = vmatpush1.msra.mxu0 0.0
      %406 = vmatprep.subr.mxu0 0.0
      %407 = vmatpush1.msra.mxu0 0.0
      %408 = vmatprep.subr.mxu0 0.0
      %409 = vmatpush1.msra.mxu0 0.0
      %410 = vmatprep.subr.mxu0 0.0
      %411 = vmatpush1.msra.mxu0 0.0
      %412 = vmatprep.subr.mxu0 0.0
      %413 = vmatpush1.msra.mxu0 0.0
      %414 = vmatprep.subr.mxu0 0.0
      %415 = vmatpush1.msra.mxu0 %v380
      %416 = vmatprep.subr.mxu0 0.0
      %417 = vmatpush2.msra.mxu0 0.0
      %418 = vmatprep.subr.mxu0 0.0
      %419 = vmatpush2.msra.mxu0 0.0
      %420 = vmatprep.subr.mxu0 0.0
      %421 = vmatpush2.msra.mxu0 0.0
      %422 = vmatprep.subr.mxu0 0.0
      %423 = vmatpush2.msra.mxu0 0.0
      %424 = vmatprep.subr.mxu0 0.0
      %425 = vmatpush2.msra.mxu0 0.0
      %426 = vmatprep.subr.mxu0 0.0
      %427 = vmatpush2.msra.mxu0 0.0
      %428 = vmatprep.subr.mxu0 0.0
      %429 = vmatpush2.msra.mxu0 0.0
      %430 = vmatprep.subr.mxu0 0.0
      %431 = vmatpush2.msra.mxu0 0.0
      %432 = vmatprep.subr.mxu0 0.0
      %433 = vmatpush2.msra.mxu0 0.0
      %434 = vmatprep.subr.mxu0 0.0
      %435 = vmatpush2.msra.mxu0 0.0
      %436 = vmatprep.subr.mxu0 0.0
      %437 = vmatpush2.msra.mxu0 0.0
      %438 = vmatprep.subr.mxu0 0.0
      %439 = vmatpush2.msra.mxu0 0.0
      %440 = vmatprep.subr.mxu0 0.0
      %441 = vmatpush2.msra.mxu0 0.0
      %442 = vmatprep.subr.mxu0 0.0
      %443 = vmatpush2.msra.mxu0 0.0
      %444 = vmatprep.subr.mxu0 0.0
      %445 = vmatpush2.msra.mxu0 0.0
      %446 = vmatprep.subr.mxu0 0.0
      %447 = vmatpush2.msra.mxu0 0.0
      %448 = vmatprep.mubr.f32.mxu0 0.0
      %449 = vmatmul.mubr.f32.gmra.mxu0 %v382
      %v450 = vpop.f32.mrf.mxu0
      %v451 = vadd.f32 0.0, %v450
      %v452 = vpop.f32.mrf.mxu0
      %453 = vdwg.mxu0
      %v454 = vadd.f32 %v379, %v451
      %455 = vst.msk [vmem:[#allocation4] sm:$0xff] %vm272, %v454
      %456 = vst.msk [vmem:[#allocation2] sm:$0xff] %vm371, %v353
      // Predicated region
      $region37: #{transformer_block.5} parent=31 // pred_check
        %p457 = pneg %p260
      $region38: #{transformer_block.5} parent=31 // pred_check_branch
        %459 = sbr.rel (%p457) target = $region40
      $region39: #{transformer_block.5} parent=31 // pred_region
        %v460 = vld [vmem:[#allocation4] sm:$0xff]
        %v461 = vld [vmem:[#allocation3] sm:$0xff]
        %v462 = vrcp.pop %v461
        %464 = vset.pattern.permute.xlu0 0
        %465 = vperm.xlu0 %464, %v462
        %v466 = vpop.permute.xlu0 %465
        %v468 = vmul.f32 %v460, %v466
        %469 = vst.msk [vmem:[%s259] sm:$0xff] %vm272, %v468
      $region40: #{transformer_block.5} parent=31 // pred_fallthru
        _
      %p470 = scmp.lt.s32.totalorder %s19, 7
      %s471 = scalar_select %p470, %s19, 7
      %p472 = scmp.lt.s32.totalorder %s20, 0
      %s473 = scalar_select %p472, %s20, 0
      %s474 = sadd.s32 %s473, %s471
      %s475 = smul.addr %s474, 8
      %s476 = scalar_lea.vmem %s3, %s475
      // Predicated region
      $region41: #{transformer_block.5} parent=31 // pred_check
        %p477 = pneg %p137
      $region42: #{transformer_block.5} parent=31 // pred_check_branch
        %479 = sbr.rel (%p477) target = $region44
      $region43: #{transformer_block.5} parent=31 // pred_region
        _
      $region44: #{transformer_block.5} parent=31 // pred_fallthru
        _
    $region32: #{transformer_block.5} parent=5 // pred_fallthru
      _
    %p480 = scmp.le.s32.totalorder 2, %s9
    // Predicated region
    $region45: #{transformer_block.5} parent=5 // pred_check
      %p481 = pneg %p480
    $region46: #{transformer_block.5} parent=5 // pred_check_branch
      %483 = sbr.rel (%p481) target = $region48
    $region47: #{transformer_block.5} parent=5 // pred_region
      %s484 = ssub.s32 %s9, 2
      // Predicated region
      $region49: #{transformer_block.5} parent=47 // pred_check
        %p485 = pneg %p143
      $region50: #{transformer_block.5} parent=47 // pred_check_branch
        %487 = sbr.rel (%p485) target = $region52
      $region51: #{transformer_block.5} parent=47 // pred_region
        %p488 = scmp.lt.s32.totalorder %s22, 7
        %s489 = scalar_select %p488, %s22, 7
        %p490 = scmp.lt.s32.totalorder %s23, 0
        %s491 = scalar_select %p490, %s23, 0
        %s492 = sadd.s32 %s491, %s489
        %s493 = smul.addr %s492, 8
        %s494 = scalar_lea.vmem %s3, %s493
      $region52: #{transformer_block.5} parent=47 // pred_fallthru
        _
    $region48: #{transformer_block.5} parent=5 // pred_fallthru
      _
  $region6: #{transformer_block.5} parent=0 // loop_footer
    %s13 = sadd.s32 1, %s9
  $region7: #{transformer_block.5} parent=0 // loop_footer_branch
    %8 = sbr.rel target = $region3
  $region8: #{transformer_block.5} parent=0 // loop_exit
    _

// kernel: transformer_block.6
$region0: #{transformer_block.6}
  #allocation0 [shape = 'u32[]', space=smem, size = 0x4, offset = 0x4, fixed_abs, tag = 'smem constant byte address 0x4 - core index']
  #allocation1 [shape = 'u32[144,128]{1,0:T(1,128)}', space=vmem, size = 0x12000, scoped, tag = 'internal scratch']
  #allocation2 [shape = 'f32[16,32]{1,0:T(8,128)}', space=vmem, size = 0x2000, scoped, tag = 'scratch operand']
  %s0 = inlined_call_operand.vmem [shape: f32[16,32], index: 0, kind: input, shape index: {}]
  %s1 = inlined_call_operand.vmem [shape: f32[32,32], index: 1, kind: input, shape index: {}]
  %s2 = inlined_call_operand.vmem [shape: f32[1,32], index: 2, kind: input, shape index: {}]
  %s3 = inlined_call_operand.vmem [shape: f32[16,32], index: 3, kind: input, shape index: {}]
  %s4 = inlined_call_operand.vmem [shape: f32[1,32], index: 4, kind: input, shape index: {}]
  %s5 = inlined_call_operand.vmem [shape: f32[1,32], index: 5, kind: input, shape index: {}]
  %s6 = inlined_call_operand.vmem [shape: f32[16,32], index: 6, kind: output, shape index: {}]
  %s7 = sld [smem:[#allocation0]]
  $region42: #{transformer_block.6} parent=0
    _
  %s9 = ssub.s32 1, %s7
  %s10 = scalar_select 0, %s9, %s7
  // Predicated region
  $region2: #{transformer_block.6} parent=0 // pred_check
    _
  $region3: #{transformer_block.6} parent=0 // pred_check_branch
    %12 = sbr.rel (0) target = $region5
  $region4: #{transformer_block.6} parent=0 // pred_region
    _
  $region5: #{transformer_block.6} parent=0 // pred_fallthru
    _
  // Predicated region
  $region6: #{transformer_block.6} parent=0 // pred_check
    _
  $region7: #{transformer_block.6} parent=0 // pred_check_branch
    %14 = sbr.rel (0) target = $region9
  $region8: #{transformer_block.6} parent=0 // pred_region
    _
  $region9: #{transformer_block.6} parent=0 // pred_fallthru
    _
  // Predicated region
  $region10: #{transformer_block.6} parent=0 // pred_check
    _
  $region11: #{transformer_block.6} parent=0 // pred_check_branch
    %16 = sbr.rel (0) target = $region13
  $region12: #{transformer_block.6} parent=0 // pred_region
    _
  $region13: #{transformer_block.6} parent=0 // pred_fallthru
    _
  // Predicated region
  $region14: #{transformer_block.6} parent=0 // pred_check
    _
  $region15: #{transformer_block.6} parent=0 // pred_check_branch
    %18 = sbr.rel (0) target = $region17
  $region16: #{transformer_block.6} parent=0 // pred_region
    _
  $region17: #{transformer_block.6} parent=0 // pred_fallthru
    _
  // Predicated region
  $region18: #{transformer_block.6} parent=0 // pred_check
    _
  $region19: #{transformer_block.6} parent=0 // pred_check_branch
    %20 = sbr.rel (0) target = $region21
  $region20: #{transformer_block.6} parent=0 // pred_region
    _
  $region21: #{transformer_block.6} parent=0 // pred_fallthru
    _
  // Predicated region
  $region22: #{transformer_block.6} parent=0 // pred_check
    _
  $region23: #{transformer_block.6} parent=0 // pred_check_branch
    %22 = sbr.rel (0) target = $region25
  $region24: #{transformer_block.6} parent=0 // pred_region
    _
  $region25: #{transformer_block.6} parent=0 // pred_fallthru
    _
  %p23 = scmp.eq.s32.totalorder 0, 0
  // Predicated region
  $region26: #{transformer_block.6} parent=0 // pred_check
    %p24 = pneg %p23
  $region27: #{transformer_block.6} parent=0 // pred_check_branch
    %26 = sbr.rel (%p24) target = $region29
  $region28: #{transformer_block.6} parent=0 // pred_region
    %vm27 = vcmask 261120
    %28 = vst.msk [vmem:[#allocation2] sm:$0xff] %vm27, 0.0
    %29 = vst.msk [vmem:[#allocation2 + $0x8] sm:$0xff] %vm27, 0.0
  $region29: #{transformer_block.6} parent=0 // pred_fallthru
    _
  %v30 = vld [vmem:[#allocation2] sm:$0xff]
  %v31 = vld [vmem:[#allocation2 + $0x8] sm:$0xff]
  %v32 = vld [vmem:[%s0] sm:$0xff]
  %v33 = vld [vmem:[%s0 + $0x8] sm:$0xff]
  %v34 = vld [vmem:[%s1] sm:$0xff]
  %v35 = vld [vmem:[%s1 + $0x8] sm:$0xff]
  %v36 = vld [vmem:[%s1 + $0x10] sm:$0xff]
  %v37 = vld [vmem:[%s1 + $0x18] sm:$0xff]
  %vm38 = vcmask 261120
  %v40 = vsel %vm38, %v32, 0
  %v43 = vsel %vm38, %v33, 0
  %45 = vmatprep.subr.mxu0 0.0
  %46 = vmatpush1.msra.mxu0 0.0
  %47 = vmatprep.subr.mxu0 0.0
  %48 = vmatpush1.msra.mxu0 0.0
  %49 = vmatprep.subr.mxu0 0.0
  %50 = vmatpush1.msra.mxu0 0.0
  %51 = vmatprep.subr.mxu0 0.0
  %52 = vmatpush1.msra.mxu0 0.0
  %53 = vmatprep.subr.mxu0 0.0
  %54 = vmatpush1.msra.mxu0 0.0
  %55 = vmatprep.subr.mxu0 0.0
  %56 = vmatpush1.msra.mxu0 0.0
  %57 = vmatprep.subr.mxu0 0.0
  %58 = vmatpush1.msra.mxu0 0.0
  %59 = vmatprep.subr.mxu0 0.0
  %60 = vmatpush1.msra.mxu0 0.0
  %61 = vmatprep.subr.mxu0 0.0
  %62 = vmatpush1.msra.mxu0 0.0
  %63 = vmatprep.subr.mxu0 0.0
  %64 = vmatpush1.msra.mxu0 0.0
  %65 = vmatprep.subr.mxu0 0.0
  %66 = vmatpush1.msra.mxu0 0.0
  %67 = vmatprep.subr.mxu0 0.0
  %68 = vmatpush1.msra.mxu0 0.0
  %69 = vmatprep.subr.mxu0 0.0
  %70 = vmatpush1.msra.mxu0 %v37
  %71 = vmatprep.subr.mxu0 0.0
  %72 = vmatpush1.msra.mxu0 %v36
  %73 = vmatprep.subr.mxu0 0.0
  %74 = vmatpush1.msra.mxu0 %v35
  %75 = vmatprep.subr.mxu0 0.0
  %76 = vmatpush1.msra.mxu0 %v34
  %77 = vmatprep.subr.mxu0 0.0
  %78 = vmatpush2.msra.mxu0 0.0
  %79 = vmatprep.subr.mxu0 0.0
  %80 = vmatpush2.msra.mxu0 0.0
  %81 = vmatprep.subr.mxu0 0.0
  %82 = vmatpush2.msra.mxu0 0.0
  %83 = vmatprep.subr.mxu0 0.0
  %84 = vmatpush2.msra.mxu0 0.0
  %85 = vmatprep.subr.mxu0 0.0
  %86 = vmatpush2.msra.mxu0 0.0
  %87 = vmatprep.subr.mxu0 0.0
  %88 = vmatpush2.msra.mxu0 0.0
  %89 = vmatprep.subr.mxu0 0.0
  %90 = vmatpush2.msra.mxu0 0.0
  %91 = vmatprep.subr.mxu0 0.0
  %92 = vmatpush2.msra.mxu0 0.0
  %93 = vmatprep.subr.mxu0 0.0
  %94 = vmatpush2.msra.mxu0 0.0
  %95 = vmatprep.subr.mxu0 0.0
  %96 = vmatpush2.msra.mxu0 0.0
  %97 = vmatprep.subr.mxu0 0.0
  %98 = vmatpush2.msra.mxu0 0.0
  %99 = vmatprep.subr.mxu0 0.0
  %100 = vmatpush2.msra.mxu0 0.0
  %101 = vmatprep.subr.mxu0 0.0
  %102 = vmatpush2.msra.mxu0 0.0
  %103 = vmatprep.subr.mxu0 0.0
  %104 = vmatpush2.msra.mxu0 0.0
  %105 = vmatprep.subr.mxu0 0.0
  %106 = vmatpush2.msra.mxu0 0.0
  %107 = vmatprep.subr.mxu0 0.0
  %108 = vmatpush2.msra.mxu0 0.0
  %109 = vmatprep.mubr.f32.mxu0 0.0
  %110 = vmatmul.mubr.f32.gmra.mxu0 %v40
  %v111 = vpop.f32.mrf.mxu0
  %v112 = vadd.f32 0.0, %v111
  %v113 = vpop.f32.mrf.mxu0
  %114 = vmatprep.mubr.f32.mxu0 0.0
  %115 = vmatmul.mubr.f32.gmra.mxu0 %v43
  %v116 = vpop.f32.mrf.mxu0
  %v117 = vadd.f32 0.0, %v116
  %v118 = vpop.f32.mrf.mxu0
  %119 = vdwg.mxu0
  %v120 = vadd.f32 %v30, %v112
  %v121 = vadd.f32 %v31, %v117
  %122 = vst.msk [vmem:[#allocation2] sm:$0xff] %vm38, %v120
  %123 = vst.msk [vmem:[#allocation2 + $0x8] sm:$0xff] %vm38, %v121
  // Predicated region
  $region30: #{transformer_block.6} parent=0 // pred_check
    %p124 = pneg %p23
  $region31: #{transformer_block.6} parent=0 // pred_check_branch
    %126 = sbr.rel (%p124) target = $region33
  $region32: #{transformer_block.6} parent=0 // pred_region
    %v127 = vld [vmem:[#allocation2] sm:$0xff]
    %v128 = vld [vmem:[#allocation2 + $0x8] sm:$0xff]
    %v129 = vld [vmem:[%s2] sm:$0x1]
    %v131 = vlaneseq
    %v132 = vshrl.u32 %v131, 7
    %v133 = vsub.s32 0, %v132
    %v134 = vrot.slane %v129, %v133
    %v136 = vadd.f32 %v127, %v134
    %v137 = vadd.f32 %v128, %v134
    %v138 = vld [vmem:[%s3] sm:$0xff]
    %v139 = vld [vmem:[%s3 + $0x8] sm:$0xff]
    %v140 = vadd.f32 %v136, %v138
    %v141 = vadd.f32 %v137, %v139
    %v142 = vsel %vm38, %v140, 0.0
    %143 = vadd.xlane.f32.xlu0 %v142
    %v144 = vpop.xlane.xlu0 %143
    %v145 = vsel %vm38, %v141, 0.0
    %146 = vadd.xlane.f32.xlu0 %v145
    %v147 = vpop.xlane.xlu0 %146
    %v148 = vrcp.pop 32.0
    %v149 = vmul.f32 %v144, %v148
    %v150 = vmul.f32 %v147, %v148
    %v151 = vsub.f32 %v140, %v149
    %v152 = vsub.f32 %v141, %v150
    %v153 = vmul.f32 %v151, %v151
    %v154 = vmul.f32 %v152, %v152
    %v155 = vsel %vm38, %v153, 0.0
    %156 = vadd.xlane.f32.xlu0 %v155
    %v157 = vpop.xlane.xlu0 %156
    %v158 = vsel %vm38, %v154, 0.0
    %159 = vadd.xlane.f32.xlu0 %v158
    %v160 = vpop.xlane.xlu0 %159
    %v161 = vmul.f32 %v157, %v148
    %v162 = vmul.f32 %v160, %v148
    %v163 = vadd.f32 %v161, 1e-05
    %v164 = vadd.f32 %v162, 1e-05
    %v165 = vrsqrt.pop %v163
    %v166 = vrsqrt.pop %v164
    %v167 = vmul.f32 %v151, %v165
    %v168 = vmul.f32 %v152, %v166
    %v169 = vld [vmem:[%s4] sm:$0x1]
    %v171 = vlaneseq
    %v172 = vshrl.u32 %v171, 7
    %v173 = vsub.s32 0, %v172
    %v174 = vrot.slane %v169, %v173
    %v176 = vmul.f32 %v167, %v174
    %v177 = vmul.f32 %v168, %v174
    %v178 = vld [vmem:[%s5] sm:$0x1]
    %v180 = vlaneseq
    %v181 = vshrl.u32 %v180, 7
    %v182 = vsub.s32 0, %v181
    %v183 = vrot.slane %v178, %v182
    %v185 = vadd.f32 %v176, %v183
    %v186 = vadd.f32 %v177, %v183
    %187 = vst.msk [vmem:[%s6] sm:$0xff] %vm38, %v185
    %188 = vst.msk [vmem:[%s6 + $0x8] sm:$0xff] %vm38, %v186
  $region33: #{transformer_block.6} parent=0 // pred_fallthru
    _
  // Predicated region
  $region34: #{transformer_block.6} parent=0 // pred_check
    _
  $region35: #{transformer_block.6} parent=0 // pred_check_branch
    %190 = sbr.rel (0) target = $region37
  $region36: #{transformer_block.6} parent=0 // pred_region
    _
  $region37: #{transformer_block.6} parent=0 // pred_fallthru
    _
  // Predicated region
  $region38: #{transformer_block.6} parent=0 // pred_check
    _
  $region39: #{transformer_block.6} parent=0 // pred_check_branch
    %192 = sbr.rel (0) target = $region41
  $region40: #{transformer_block.6} parent=0 // pred_region
    _
  $region41: #{transformer_block.6} parent=0 // pred_fallthru
    _

</llo_original>
